<compile_context>
chip_gen: v7x
topology: tpu7x:2x2x1
jax: 0.10.0
libtpu: 0.0.40
codegen_flags: <defaults>
</compile_context>

<pallas_src>
import jax
import jax.numpy as jnp
from jax.experimental import pallas as pl
from jax.experimental.pallas import tpu as pltpu


# ----------------------------- Pallas kernel --------------------------------
def lstm_kernel(x_ref, wih_ref, whh_ref, b_ref, wf_ref, bf_ref, y_ref,
                seq_ref, xp_ref):
    """Multi-layer LSTM forward, whole problem resident in VMEM.

    x_ref   : (T*Bp, D)  bf16  embedded inputs, time-major, batch padded to Bp
    wih_ref : (L, D, 4D) bf16  input->hidden weights (transposed)
    whh_ref : (L, D, 4D) bf16  hidden->hidden weights (transposed)
    b_ref   : (L, 1, 4D) f32   b_ih + b_hh per layer
    wf_ref  : (D, Cp)    bf16  final linear weight, lane-padded to Cp
    bf_ref  : (1, Cp)    f32   final linear bias, lane-padded
    y_ref   : (Bp, Cp)   f32   output logits (padded)
    seq_ref : (T*Bp, D)  f32   scratch: current layer's output sequence
    xp_ref  : (T*Bp, 4D) bf16  scratch: hoisted X @ Wih + b for current layer
    """
    TB, D = seq_ref.shape
    Bp = y_ref.shape[0]            # padded batch (multiple of 8 sublanes)
    T = TB // Bp
    depth = wih_ref.shape[0]

    h_last = jnp.zeros((Bp, D), jnp.float32)

    for layer in range(depth):                     # depth is small & static
        wih = wih_ref[layer]                       # (D, 4D) bf16
        whh = whh_ref[layer]                       # (D, 4D) bf16
        b = b_ref[layer]                           # (1, 4D) f32

        # ---- hoisted input projection: one big-M matmul per layer ----------
        # Layer 0 reads the (already bf16) embedded inputs directly.
        if layer == 0:
            layer_in = x_ref[...]                          # (T*Bp, D) bf16
        else:
            layer_in = seq_ref[...].astype(jnp.bfloat16)   # (T*Bp, D)
        xp = jnp.dot(layer_in, wih,
                     preferred_element_type=jnp.float32) + b   # (T*Bp, 4D) f32
        xp_ref[...] = xp.astype(jnp.bfloat16)

        is_last = layer == depth - 1

        # ---- serial recurrence: only h @ Whh + elementwise per step --------
        # Static Python loop => every slice offset is a compile-time constant,
        # aligned to the 8-sublane tile.
        h = jnp.zeros((Bp, D), jnp.float32)
        c = jnp.zeros((Bp, D), jnp.float32)
        for t in range(T):
            row = t * Bp                                   # static int
            gates = (
                xp_ref[pl.ds(row, Bp), :].astype(jnp.float32)
                + jnp.dot(h.astype(jnp.bfloat16), whh,
                          preferred_element_type=jnp.float32)   # (Bp, 4D)
            )
            # Full-vreg nonlinearities, then slice gates (order i, f, g, o).
            sig = jax.nn.sigmoid(gates)                    # one EUP push
            th = jnp.tanh(gates)                           # one EUP push
            i_g = sig[:, 0 * D:1 * D]
            f_g = sig[:, 1 * D:2 * D]
            g_g = th[:, 2 * D:3 * D]
            o_g = sig[:, 3 * D:4 * D]
            c = f_g * c + i_g * g_g
            h = o_g * jnp.tanh(c)
            if not is_last:
                # feed next layer; skipped entirely on the final layer
                seq_ref[pl.ds(row, Bp), :] = h
        h_last = h

    # final linear on hn[-1]; bf16 operands, f32 accum, lane-dense store
    y = jnp.dot(h_last.astype(jnp.bfloat16), wf_ref[...],
                preferred_element_type=jnp.float32) + bf_ref[...]
    y_ref[...] = y.astype(y_ref.dtype)


# ----------------------------- Python wrapper --------------------------------
@jax.jit
def lstm_forward(tokens, emb, wih, whh, b, wf, bf):
    """tokens: (B, T) int32.  Returns logits (B, n_class) float32."""
    B, T = tokens.shape
    D = emb.shape[1]
    C = wf.shape[1]

    Bp = ((B + 7) // 8) * 8            # pad batch to sublane multiple of 8
    Cp = ((C + 127) // 128) * 128      # lane-dense classifier output

    # Glue: embedding gather (padding_idx=0 row is zeroed in the table itself),
    # time-major layout, batch padding, flatten to 2D, cast to bf16 for the kernel.
    x = jnp.take(emb, tokens, axis=0)               # (B, T, D)
    x = jnp.transpose(x, (1, 0, 2))                 # (T, B, D)
    x = jnp.pad(x, ((0, 0), (0, Bp - B), (0, 0)))   # (T, Bp, D)
    x = x.reshape(T * Bp, D).astype(jnp.bfloat16)

    # bf16 matmul operands (f32 accumulation / f32 state inside the kernel).
    wih_bf = wih.astype(jnp.bfloat16)
    whh_bf = whh.astype(jnp.bfloat16)

    # Lane-dense classifier: zero-pad columns to a multiple of 128, bf16 weight.
    wf_p = jnp.pad(wf, ((0, 0), (0, Cp - C))).astype(jnp.bfloat16)
    bf_p = jnp.pad(bf, ((0, 0), (0, Cp - C)))

    vmem = pl.BlockSpec(memory_space=pltpu.MemorySpace.VMEM)
    y_pad = pl.pallas_call(
        lstm_kernel,
        out_shape=jax.ShapeDtypeStruct((Bp, Cp), jnp.float32),
        in_specs=[vmem] * 6,
        out_specs=vmem,
        scratch_shapes=[
            pltpu.VMEM((T * Bp, D), jnp.float32),        # seq: layer output seq
            pltpu.VMEM((T * Bp, 4 * D), jnp.bfloat16),   # xp : hoisted X@Wih + b
        ],
    )(x, wih_bf, whh_bf, b, wf_p, bf_p)
    return y_pad[:B, :C]


# ----------------------------- pure-JAX reference ----------------------------
def lstm_reference(tokens, emb, wih, whh, b, wf, bf):
    """Reference mirroring the kernel's bf16-operand / f32-accumulation math."""
    x = jnp.take(emb, tokens, axis=0).astype(jnp.float32)   # (B, T, D)
    B, T, D = x.shape
    depth = wih.shape[0]
    seq = x
    h = jnp.zeros((B, D), jnp.float32)
    for layer in range(depth):
        wih_l = wih[layer].astype(jnp.bfloat16)
        whh_l = whh[layer].astype(jnp.bfloat16)
        b_l = b[layer]
        h = jnp.zeros((B, D), jnp.float32)
        c = jnp.zeros((B, D), jnp.float32)
        outs = []
        for t in range(T):
            xp_t = (
                jnp.dot(seq[:, t, :].astype(jnp.bfloat16), wih_l,
                        preferred_element_type=jnp.float32)
                + b_l
            )
            xp_t = xp_t.astype(jnp.bfloat16).astype(jnp.float32)  # mirror bf16 xp
            gates = xp_t + jnp.dot(h.astype(jnp.bfloat16), whh_l,
                                   preferred_element_type=jnp.float32)
            sig = jax.nn.sigmoid(gates)
            th = jnp.tanh(gates)
            i_g = sig[:, 0 * D:1 * D]
            f_g = sig[:, 1 * D:2 * D]
            g_g = th[:, 2 * D:3 * D]
            o_g = sig[:, 3 * D:4 * D]
            c = f_g * c + i_g * g_g
            h = o_g * jnp.tanh(c)
            outs.append(h)
        seq = jnp.stack(outs, axis=1)
    return (jnp.dot(h.astype(jnp.bfloat16), wf.astype(jnp.bfloat16),
                    preferred_element_type=jnp.float32) + bf)


# ----------------------------- main ------------------------------------------
if __name__ == "__main__":
    # Module hyper-params (problem != 'adding' -> embedding path).
    vocab_size, dim, depth, n_class = 32, 32, 2, 4
    B, T = 2, 8

    key = jax.random.PRNGKey(0)
    keys = jax.random.split(key, 8)

    # Embedding ~ N(0,1), row 0 zeroed (padding_idx=0).
    emb = jax.random.normal(keys[0], (vocab_size, dim), jnp.float32)
    emb = emb.at[0].set(0.0)

    # LSTM weights, PyTorch-style uniform(-1/sqrt(H), 1/sqrt(H)), gate order i,f,g,o.
    s = 1.0 / jnp.sqrt(jnp.float32(dim))
    wih = jax.random.uniform(keys[1], (depth, dim, 4 * dim), jnp.float32, -s, s)
    whh = jax.random.uniform(keys[2], (depth, dim, 4 * dim), jnp.float32, -s, s)
    b_ih = jax.random.uniform(keys[3], (depth, 1, 4 * dim), jnp.float32, -s, s)
    b_hh = jax.random.uniform(keys[4], (depth, 1, 4 * dim), jnp.float32, -s, s)
    b = b_ih + b_hh

    # Final linear (dim -> n_class), stored transposed as (dim, n_class).
    sf = 1.0 / jnp.sqrt(jnp.float32(dim))
    wf = jax.random.uniform(keys[5], (dim, n_class), jnp.float32, -sf, sf)
    bf = jax.random.uniform(keys[6], (1, n_class), jnp.float32, -sf, sf)

    # Token inputs (B, T), some padding zeros possible.
    tokens = jax.random.randint(keys[7], (B, T), 0, vocab_size, jnp.int32)

    y = lstm_forward(tokens, emb, wih, whh, b, wf, bf)
    jax.block_until_ready(y)

    y_ref = lstm_reference(tokens, emb, wih, whh, b, wf, bf)
    assert y.shape == (B, n_class)
    assert jnp.allclose(y, y_ref, atol=2e-4, rtol=2e-4), "mismatch vs reference"

    # TODO(synk): 'adding' problem path (nn.Linear(2, dim) on float inputs) not wired;
    # only the embedding/classification path is implemented here.
    print("KERNEL_OK")
</pallas_src>

<mosaic_0001>
module attributes {stable_mosaic.version = 11 : i64} {
  func.func @lstm_kernel(%arg0: memref<64x32xbf16, #tpu.memory_space<vmem>>, %arg1: memref<2x32x128xbf16, #tpu.memory_space<vmem>>, %arg2: memref<2x32x128xbf16, #tpu.memory_space<vmem>>, %arg3: memref<2x1x128xf32, #tpu.memory_space<vmem>>, %arg4: memref<32x128xbf16, #tpu.memory_space<vmem>>, %arg5: memref<1x128xf32, #tpu.memory_space<vmem>>, %arg6: memref<8x128xf32, #tpu.memory_space<vmem>>, %arg7: memref<64x32xf32, #tpu.memory_space<vmem>>, %arg8: memref<64x128xbf16, #tpu.memory_space<vmem>>) attributes {dimension_semantics = [], scalar_prefetch = 0 : i64, scratch_operands = 2 : i64, tpu.core_type = #tpu.core_type<tc>} {
    %c0 = arith.constant 0 : index
    %c0_0 = arith.constant 0 : index
    %c0_1 = arith.constant 0 : index
    %0 = vector.load %arg1[%c0, %c0_0, %c0_1] : memref<2x32x128xbf16, #tpu.memory_space<vmem>>, vector<1x32x128xbf16>
    %1 = vector.shape_cast %0 : vector<1x32x128xbf16> to vector<32x128xbf16>
    %c0_2 = arith.constant 0 : index
    %c0_3 = arith.constant 0 : index
    %c0_4 = arith.constant 0 : index
    %2 = vector.load %arg2[%c0_2, %c0_3, %c0_4] : memref<2x32x128xbf16, #tpu.memory_space<vmem>>, vector<1x32x128xbf16>
    %3 = vector.shape_cast %2 : vector<1x32x128xbf16> to vector<32x128xbf16>
    %c0_5 = arith.constant 0 : index
    %c0_6 = arith.constant 0 : index
    %c0_7 = arith.constant 0 : index
    %4 = vector.load %arg3[%c0_5, %c0_6, %c0_7] : memref<2x1x128xf32, #tpu.memory_space<vmem>>, vector<1x1x128xf32>
    %5 = vector.shape_cast %4 : vector<1x1x128xf32> to vector<1x128xf32>
    %c0_8 = arith.constant 0 : index
    %c0_9 = arith.constant 0 : index
    %6 = vector.load %arg0[%c0_8, %c0_9] : memref<64x32xbf16, #tpu.memory_space<vmem>>, vector<64x32xbf16>
    %cst = arith.constant dense<0.000000e+00> : vector<64x128xf32>
    %7 = tpu.matmul %6, %1, %cst {dimension_numbers = #tpu.dot_dimension_numbers<[1], [0], [0], [1], [0, 0, 1, 1], [], []>} : vector<64x32xbf16>, vector<32x128xbf16>, vector<64x128xf32> -> vector<64x128xf32>
    %8 = vector.broadcast %5 : vector<1x128xf32> to vector<64x128xf32>
    %9 = arith.addf %7, %8 : vector<64x128xf32>
    %10 = arith.truncf %9 : vector<64x128xf32> to vector<64x128xbf16>
    %c0_10 = arith.constant 0 : index
    %c0_11 = arith.constant 0 : index
    %11 = vector.load %arg8[%c0_10, %c0_11] : memref<64x128xbf16, #tpu.memory_space<vmem>>, vector<64x128xbf16>
    tpu.vector_store %arg8[%c0_10, %c0_11], %10 {strides = array<i32>} : memref<64x128xbf16, #tpu.memory_space<vmem>>, vector<64x128xbf16>,
    %cst_12 = arith.constant 0.000000e+00 : f32
    %12 = vector.broadcast %cst_12 : f32 to vector<8x32xf32>
    %cst_13 = arith.constant 0.000000e+00 : f32
    %13 = vector.broadcast %cst_13 : f32 to vector<8x32xf32>
    %c0_14 = arith.constant 0 : index
    %c0_15 = arith.constant 0 : index
    %14 = vector.load %arg8[%c0_14, %c0_15] : memref<64x128xbf16, #tpu.memory_space<vmem>>, vector<8x128xbf16>
    %15 = arith.extf %14 : vector<8x128xbf16> to vector<8x128xf32>
    %16 = arith.truncf %12 : vector<8x32xf32> to vector<8x32xbf16>
    %cst_16 = arith.constant dense<0.000000e+00> : vector<8x128xf32>
    %17 = tpu.matmul %16, %3, %cst_16 {dimension_numbers = #tpu.dot_dimension_numbers<[1], [0], [0], [1], [0, 0, 1, 1], [], []>} : vector<8x32xbf16>, vector<32x128xbf16>, vector<8x128xf32> -> vector<8x128xf32>
    %18 = arith.addf %15, %17 : vector<8x128xf32>
    %19 = arith.negf %18 : vector<8x128xf32>
    %20 = math.exp %19 : vector<8x128xf32>
    %cst_17 = arith.constant 1.000000e+00 : f32
    %21 = vector.broadcast %cst_17 : f32 to vector<8x128xf32>
    %22 = arith.addf %21, %20 : vector<8x128xf32>
    %23 = arith.divf %21, %22 : vector<8x128xf32>
    %24 = math.tanh %18 : vector<8x128xf32>
    %25 = vector.extract_strided_slice %23 {offsets = [0, 0], sizes = [8, 32], strides = [1, 1]} : vector<8x128xf32> to vector<8x32xf32>
    %26 = vector.extract_strided_slice %23 {offsets = [0, 32], sizes = [8, 32], strides = [1, 1]} : vector<8x128xf32> to vector<8x32xf32>
    %27 = vector.extract_strided_slice %24 {offsets = [0, 64], sizes = [8, 32], strides = [1, 1]} : vector<8x128xf32> to vector<8x32xf32>
    %28 = vector.extract_strided_slice %23 {offsets = [0, 96], sizes = [8, 32], strides = [1, 1]} : vector<8x128xf32> to vector<8x32xf32>
    %29 = arith.mulf %26, %13 : vector<8x32xf32>
    %30 = arith.mulf %25, %27 : vector<8x32xf32>
    %31 = arith.addf %29, %30 : vector<8x32xf32>
    %32 = math.tanh %31 : vector<8x32xf32>
    %33 = arith.mulf %28, %32 : vector<8x32xf32>
    %c0_18 = arith.constant 0 : index
    %c0_19 = arith.constant 0 : index
    %34 = vector.load %arg7[%c0_18, %c0_19] : memref<64x32xf32, #tpu.memory_space<vmem>>, vector<8x32xf32>
    tpu.vector_store %arg7[%c0_18, %c0_19], %33 {strides = array<i32>} : memref<64x32xf32, #tpu.memory_space<vmem>>, vector<8x32xf32>,
    %c8 = arith.constant 8 : index
    %c0_20 = arith.constant 0 : index
    %35 = vector.load %arg8[%c8, %c0_20] : memref<64x128xbf16, #tpu.memory_space<vmem>>, vector<8x128xbf16>
    %36 = arith.extf %35 : vector<8x128xbf16> to vector<8x128xf32>
    %37 = arith.truncf %33 : vector<8x32xf32> to vector<8x32xbf16>
    %cst_21 = arith.constant dense<0.000000e+00> : vector<8x128xf32>
    %38 = tpu.matmul %37, %3, %cst_21 {dimension_numbers = #tpu.dot_dimension_numbers<[1], [0], [0], [1], [0, 0, 1, 1], [], []>} : vector<8x32xbf16>, vector<32x128xbf16>, vector<8x128xf32> -> vector<8x128xf32>
    %39 = arith.addf %36, %38 : vector<8x128xf32>
    %40 = arith.negf %39 : vector<8x128xf32>
    %41 = math.exp %40 : vector<8x128xf32>
    %cst_22 = arith.constant 1.000000e+00 : f32
    %42 = vector.broadcast %cst_22 : f32 to vector<8x128xf32>
    %43 = arith.addf %42, %41 : vector<8x128xf32>
    %44 = arith.divf %42, %43 : vector<8x128xf32>
    %45 = math.tanh %39 : vector<8x128xf32>
    %46 = vector.extract_strided_slice %44 {offsets = [0, 0], sizes = [8, 32], strides = [1, 1]} : vector<8x128xf32> to vector<8x32xf32>
    %47 = vector.extract_strided_slice %44 {offsets = [0, 32], sizes = [8, 32], strides = [1, 1]} : vector<8x128xf32> to vector<8x32xf32>
    %48 = vector.extract_strided_slice %45 {offsets = [0, 64], sizes = [8, 32], strides = [1, 1]} : vector<8x128xf32> to vector<8x32xf32>
    %49 = vector.extract_strided_slice %44 {offsets = [0, 96], sizes = [8, 32], strides = [1, 1]} : vector<8x128xf32> to vector<8x32xf32>
    %50 = arith.mulf %47, %31 : vector<8x32xf32>
    %51 = arith.mulf %46, %48 : vector<8x32xf32>
    %52 = arith.addf %50, %51 : vector<8x32xf32>
    %53 = math.tanh %52 : vector<8x32xf32>
    %54 = arith.mulf %49, %53 : vector<8x32xf32>
    %c8_23 = arith.constant 8 : index
    %c0_24 = arith.constant 0 : index
    %55 = vector.load %arg7[%c8_23, %c0_24] : memref<64x32xf32, #tpu.memory_space<vmem>>, vector<8x32xf32>
    tpu.vector_store %arg7[%c8_23, %c0_24], %54 {strides = array<i32>} : memref<64x32xf32, #tpu.memory_space<vmem>>, vector<8x32xf32>,
    %c16 = arith.constant 16 : index
    %c0_25 = arith.constant 0 : index
    %56 = vector.load %arg8[%c16, %c0_25] : memref<64x128xbf16, #tpu.memory_space<vmem>>, vector<8x128xbf16>
    %57 = arith.extf %56 : vector<8x128xbf16> to vector<8x128xf32>
    %58 = arith.truncf %54 : vector<8x32xf32> to vector<8x32xbf16>
    %cst_26 = arith.constant dense<0.000000e+00> : vector<8x128xf32>
    %59 = tpu.matmul %58, %3, %cst_26 {dimension_numbers = #tpu.dot_dimension_numbers<[1], [0], [0], [1], [0, 0, 1, 1], [], []>} : vector<8x32xbf16>, vector<32x128xbf16>, vector<8x128xf32> -> vector<8x128xf32>
    %60 = arith.addf %57, %59 : vector<8x128xf32>
    %61 = arith.negf %60 : vector<8x128xf32>
    %62 = math.exp %61 : vector<8x128xf32>
    %cst_27 = arith.constant 1.000000e+00 : f32
    %63 = vector.broadcast %cst_27 : f32 to vector<8x128xf32>
    %64 = arith.addf %63, %62 : vector<8x128xf32>
    %65 = arith.divf %63, %64 : vector<8x128xf32>
    %66 = math.tanh %60 : vector<8x128xf32>
    %67 = vector.extract_strided_slice %65 {offsets = [0, 0], sizes = [8, 32], strides = [1, 1]} : vector<8x128xf32> to vector<8x32xf32>
    %68 = vector.extract_strided_slice %65 {offsets = [0, 32], sizes = [8, 32], strides = [1, 1]} : vector<8x128xf32> to vector<8x32xf32>
    %69 = vector.extract_strided_slice %66 {offsets = [0, 64], sizes = [8, 32], strides = [1, 1]} : vector<8x128xf32> to vector<8x32xf32>
    %70 = vector.extract_strided_slice %65 {offsets = [0, 96], sizes = [8, 32], strides = [1, 1]} : vector<8x128xf32> to vector<8x32xf32>
    %71 = arith.mulf %68, %52 : vector<8x32xf32>
    %72 = arith.mulf %67, %69 : vector<8x32xf32>
    %73 = arith.addf %71, %72 : vector<8x32xf32>
    %74 = math.tanh %73 : vector<8x32xf32>
    %75 = arith.mulf %70, %74 : vector<8x32xf32>
    %c16_28 = arith.constant 16 : index
    %c0_29 = arith.constant 0 : index
    %76 = vector.load %arg7[%c16_28, %c0_29] : memref<64x32xf32, #tpu.memory_space<vmem>>, vector<8x32xf32>
    tpu.vector_store %arg7[%c16_28, %c0_29], %75 {strides = array<i32>} : memref<64x32xf32, #tpu.memory_space<vmem>>, vector<8x32xf32>,
    %c24 = arith.constant 24 : index
    %c0_30 = arith.constant 0 : index
    %77 = vector.load %arg8[%c24, %c0_30] : memref<64x128xbf16, #tpu.memory_space<vmem>>, vector<8x128xbf16>
    %78 = arith.extf %77 : vector<8x128xbf16> to vector<8x128xf32>
    %79 = arith.truncf %75 : vector<8x32xf32> to vector<8x32xbf16>
    %cst_31 = arith.constant dense<0.000000e+00> : vector<8x128xf32>
    %80 = tpu.matmul %79, %3, %cst_31 {dimension_numbers = #tpu.dot_dimension_numbers<[1], [0], [0], [1], [0, 0, 1, 1], [], []>} : vector<8x32xbf16>, vector<32x128xbf16>, vector<8x128xf32> -> vector<8x128xf32>
    %81 = arith.addf %78, %80 : vector<8x128xf32>
    %82 = arith.negf %81 : vector<8x128xf32>
    %83 = math.exp %82 : vector<8x128xf32>
    %cst_32 = arith.constant 1.000000e+00 : f32
    %84 = vector.broadcast %cst_32 : f32 to vector<8x128xf32>
    %85 = arith.addf %84, %83 : vector<8x128xf32>
    %86 = arith.divf %84, %85 : vector<8x128xf32>
    %87 = math.tanh %81 : vector<8x128xf32>
    %88 = vector.extract_strided_slice %86 {offsets = [0, 0], sizes = [8, 32], strides = [1, 1]} : vector<8x128xf32> to vector<8x32xf32>
    %89 = vector.extract_strided_slice %86 {offsets = [0, 32], sizes = [8, 32], strides = [1, 1]} : vector<8x128xf32> to vector<8x32xf32>
    %90 = vector.extract_strided_slice %87 {offsets = [0, 64], sizes = [8, 32], strides = [1, 1]} : vector<8x128xf32> to vector<8x32xf32>
    %91 = vector.extract_strided_slice %86 {offsets = [0, 96], sizes = [8, 32], strides = [1, 1]} : vector<8x128xf32> to vector<8x32xf32>
    %92 = arith.mulf %89, %73 : vector<8x32xf32>
    %93 = arith.mulf %88, %90 : vector<8x32xf32>
    %94 = arith.addf %92, %93 : vector<8x32xf32>
    %95 = math.tanh %94 : vector<8x32xf32>
    %96 = arith.mulf %91, %95 : vector<8x32xf32>
    %c24_33 = arith.constant 24 : index
    %c0_34 = arith.constant 0 : index
    %97 = vector.load %arg7[%c24_33, %c0_34] : memref<64x32xf32, #tpu.memory_space<vmem>>, vector<8x32xf32>
    tpu.vector_store %arg7[%c24_33, %c0_34], %96 {strides = array<i32>} : memref<64x32xf32, #tpu.memory_space<vmem>>, vector<8x32xf32>,
    %c32 = arith.constant 32 : index
    %c0_35 = arith.constant 0 : index
    %98 = vector.load %arg8[%c32, %c0_35] : memref<64x128xbf16, #tpu.memory_space<vmem>>, vector<8x128xbf16>
    %99 = arith.extf %98 : vector<8x128xbf16> to vector<8x128xf32>
    %100 = arith.truncf %96 : vector<8x32xf32> to vector<8x32xbf16>
    %cst_36 = arith.constant dense<0.000000e+00> : vector<8x128xf32>
    %101 = tpu.matmul %100, %3, %cst_36 {dimension_numbers = #tpu.dot_dimension_numbers<[1], [0], [0], [1], [0, 0, 1, 1], [], []>} : vector<8x32xbf16>, vector<32x128xbf16>, vector<8x128xf32> -> vector<8x128xf32>
    %102 = arith.addf %99, %101 : vector<8x128xf32>
    %103 = arith.negf %102 : vector<8x128xf32>
    %104 = math.exp %103 : vector<8x128xf32>
    %cst_37 = arith.constant 1.000000e+00 : f32
    %105 = vector.broadcast %cst_37 : f32 to vector<8x128xf32>
    %106 = arith.addf %105, %104 : vector<8x128xf32>
    %107 = arith.divf %105, %106 : vector<8x128xf32>
    %108 = math.tanh %102 : vector<8x128xf32>
    %109 = vector.extract_strided_slice %107 {offsets = [0, 0], sizes = [8, 32], strides = [1, 1]} : vector<8x128xf32> to vector<8x32xf32>
    %110 = vector.extract_strided_slice %107 {offsets = [0, 32], sizes = [8, 32], strides = [1, 1]} : vector<8x128xf32> to vector<8x32xf32>
    %111 = vector.extract_strided_slice %108 {offsets = [0, 64], sizes = [8, 32], strides = [1, 1]} : vector<8x128xf32> to vector<8x32xf32>
    %112 = vector.extract_strided_slice %107 {offsets = [0, 96], sizes = [8, 32], strides = [1, 1]} : vector<8x128xf32> to vector<8x32xf32>
    %113 = arith.mulf %110, %94 : vector<8x32xf32>
    %114 = arith.mulf %109, %111 : vector<8x32xf32>
    %115 = arith.addf %113, %114 : vector<8x32xf32>
    %116 = math.tanh %115 : vector<8x32xf32>
    %117 = arith.mulf %112, %116 : vector<8x32xf32>
    %c32_38 = arith.constant 32 : index
    %c0_39 = arith.constant 0 : index
    %118 = vector.load %arg7[%c32_38, %c0_39] : memref<64x32xf32, #tpu.memory_space<vmem>>, vector<8x32xf32>
    tpu.vector_store %arg7[%c32_38, %c0_39], %117 {strides = array<i32>} : memref<64x32xf32, #tpu.memory_space<vmem>>, vector<8x32xf32>,
    %c40 = arith.constant 40 : index
    %c0_40 = arith.constant 0 : index
    %119 = vector.load %arg8[%c40, %c0_40] : memref<64x128xbf16, #tpu.memory_space<vmem>>, vector<8x128xbf16>
    %120 = arith.extf %119 : vector<8x128xbf16> to vector<8x128xf32>
    %121 = arith.truncf %117 : vector<8x32xf32> to vector<8x32xbf16>
    %cst_41 = arith.constant dense<0.000000e+00> : vector<8x128xf32>
    %122 = tpu.matmul %121, %3, %cst_41 {dimension_numbers = #tpu.dot_dimension_numbers<[1], [0], [0], [1], [0, 0, 1, 1], [], []>} : vector<8x32xbf16>, vector<32x128xbf16>, vector<8x128xf32> -> vector<8x128xf32>
    %123 = arith.addf %120, %122 : vector<8x128xf32>
    %124 = arith.negf %123 : vector<8x128xf32>
    %125 = math.exp %124 : vector<8x128xf32>
    %cst_42 = arith.constant 1.000000e+00 : f32
    %126 = vector.broadcast %cst_42 : f32 to vector<8x128xf32>
    %127 = arith.addf %126, %125 : vector<8x128xf32>
    %128 = arith.divf %126, %127 : vector<8x128xf32>
    %129 = math.tanh %123 : vector<8x128xf32>
    %130 = vector.extract_strided_slice %128 {offsets = [0, 0], sizes = [8, 32], strides = [1, 1]} : vector<8x128xf32> to vector<8x32xf32>
    %131 = vector.extract_strided_slice %128 {offsets = [0, 32], sizes = [8, 32], strides = [1, 1]} : vector<8x128xf32> to vector<8x32xf32>
    %132 = vector.extract_strided_slice %129 {offsets = [0, 64], sizes = [8, 32], strides = [1, 1]} : vector<8x128xf32> to vector<8x32xf32>
    %133 = vector.extract_strided_slice %128 {offsets = [0, 96], sizes = [8, 32], strides = [1, 1]} : vector<8x128xf32> to vector<8x32xf32>
    %134 = arith.mulf %131, %115 : vector<8x32xf32>
    %135 = arith.mulf %130, %132 : vector<8x32xf32>
    %136 = arith.addf %134, %135 : vector<8x32xf32>
    %137 = math.tanh %136 : vector<8x32xf32>
    %138 = arith.mulf %133, %137 : vector<8x32xf32>
    %c40_43 = arith.constant 40 : index
    %c0_44 = arith.constant 0 : index
    %139 = vector.load %arg7[%c40_43, %c0_44] : memref<64x32xf32, #tpu.memory_space<vmem>>, vector<8x32xf32>
    tpu.vector_store %arg7[%c40_43, %c0_44], %138 {strides = array<i32>} : memref<64x32xf32, #tpu.memory_space<vmem>>, vector<8x32xf32>,
    %c48 = arith.constant 48 : index
    %c0_45 = arith.constant 0 : index
    %140 = vector.load %arg8[%c48, %c0_45] : memref<64x128xbf16, #tpu.memory_space<vmem>>, vector<8x128xbf16>
    %141 = arith.extf %140 : vector<8x128xbf16> to vector<8x128xf32>
    %142 = arith.truncf %138 : vector<8x32xf32> to vector<8x32xbf16>
    %cst_46 = arith.constant dense<0.000000e+00> : vector<8x128xf32>
    %143 = tpu.matmul %142, %3, %cst_46 {dimension_numbers = #tpu.dot_dimension_numbers<[1], [0], [0], [1], [0, 0, 1, 1], [], []>} : vector<8x32xbf16>, vector<32x128xbf16>, vector<8x128xf32> -> vector<8x128xf32>
    %144 = arith.addf %141, %143 : vector<8x128xf32>
    %145 = arith.negf %144 : vector<8x128xf32>
    %146 = math.exp %145 : vector<8x128xf32>
    %cst_47 = arith.constant 1.000000e+00 : f32
    %147 = vector.broadcast %cst_47 : f32 to vector<8x128xf32>
    %148 = arith.addf %147, %146 : vector<8x128xf32>
    %149 = arith.divf %147, %148 : vector<8x128xf32>
    %150 = math.tanh %144 : vector<8x128xf32>
    %151 = vector.extract_strided_slice %149 {offsets = [0, 0], sizes = [8, 32], strides = [1, 1]} : vector<8x128xf32> to vector<8x32xf32>
    %152 = vector.extract_strided_slice %149 {offsets = [0, 32], sizes = [8, 32], strides = [1, 1]} : vector<8x128xf32> to vector<8x32xf32>
    %153 = vector.extract_strided_slice %150 {offsets = [0, 64], sizes = [8, 32], strides = [1, 1]} : vector<8x128xf32> to vector<8x32xf32>
    %154 = vector.extract_strided_slice %149 {offsets = [0, 96], sizes = [8, 32], strides = [1, 1]} : vector<8x128xf32> to vector<8x32xf32>
    %155 = arith.mulf %152, %136 : vector<8x32xf32>
    %156 = arith.mulf %151, %153 : vector<8x32xf32>
    %157 = arith.addf %155, %156 : vector<8x32xf32>
    %158 = math.tanh %157 : vector<8x32xf32>
    %159 = arith.mulf %154, %158 : vector<8x32xf32>
    %c48_48 = arith.constant 48 : index
    %c0_49 = arith.constant 0 : index
    %160 = vector.load %arg7[%c48_48, %c0_49] : memref<64x32xf32, #tpu.memory_space<vmem>>, vector<8x32xf32>
    tpu.vector_store %arg7[%c48_48, %c0_49], %159 {strides = array<i32>} : memref<64x32xf32, #tpu.memory_space<vmem>>, vector<8x32xf32>,
    %c56 = arith.constant 56 : index
    %c0_50 = arith.constant 0 : index
    %161 = vector.load %arg8[%c56, %c0_50] : memref<64x128xbf16, #tpu.memory_space<vmem>>, vector<8x128xbf16>
    %162 = arith.extf %161 : vector<8x128xbf16> to vector<8x128xf32>
    %163 = arith.truncf %159 : vector<8x32xf32> to vector<8x32xbf16>
    %cst_51 = arith.constant dense<0.000000e+00> : vector<8x128xf32>
    %164 = tpu.matmul %163, %3, %cst_51 {dimension_numbers = #tpu.dot_dimension_numbers<[1], [0], [0], [1], [0, 0, 1, 1], [], []>} : vector<8x32xbf16>, vector<32x128xbf16>, vector<8x128xf32> -> vector<8x128xf32>
    %165 = arith.addf %162, %164 : vector<8x128xf32>
    %166 = arith.negf %165 : vector<8x128xf32>
    %167 = math.exp %166 : vector<8x128xf32>
    %cst_52 = arith.constant 1.000000e+00 : f32
    %168 = vector.broadcast %cst_52 : f32 to vector<8x128xf32>
    %169 = arith.addf %168, %167 : vector<8x128xf32>
    %170 = arith.divf %168, %169 : vector<8x128xf32>
    %171 = math.tanh %165 : vector<8x128xf32>
    %172 = vector.extract_strided_slice %170 {offsets = [0, 0], sizes = [8, 32], strides = [1, 1]} : vector<8x128xf32> to vector<8x32xf32>
    %173 = vector.extract_strided_slice %170 {offsets = [0, 32], sizes = [8, 32], strides = [1, 1]} : vector<8x128xf32> to vector<8x32xf32>
    %174 = vector.extract_strided_slice %171 {offsets = [0, 64], sizes = [8, 32], strides = [1, 1]} : vector<8x128xf32> to vector<8x32xf32>
    %175 = vector.extract_strided_slice %170 {offsets = [0, 96], sizes = [8, 32], strides = [1, 1]} : vector<8x128xf32> to vector<8x32xf32>
    %176 = arith.mulf %173, %157 : vector<8x32xf32>
    %177 = arith.mulf %172, %174 : vector<8x32xf32>
    %178 = arith.addf %176, %177 : vector<8x32xf32>
    %179 = math.tanh %178 : vector<8x32xf32>
    %180 = arith.mulf %175, %179 : vector<8x32xf32>
    %c56_53 = arith.constant 56 : index
    %c0_54 = arith.constant 0 : index
    %181 = vector.load %arg7[%c56_53, %c0_54] : memref<64x32xf32, #tpu.memory_space<vmem>>, vector<8x32xf32>
    tpu.vector_store %arg7[%c56_53, %c0_54], %180 {strides = array<i32>} : memref<64x32xf32, #tpu.memory_space<vmem>>, vector<8x32xf32>,
    %c1 = arith.constant 1 : index
    %c0_55 = arith.constant 0 : index
    %c0_56 = arith.constant 0 : index
    %182 = vector.load %arg1[%c1, %c0_55, %c0_56] : memref<2x32x128xbf16, #tpu.memory_space<vmem>>, vector<1x32x128xbf16>
    %183 = vector.shape_cast %182 : vector<1x32x128xbf16> to vector<32x128xbf16>
    %c1_57 = arith.constant 1 : index
    %c0_58 = arith.constant 0 : index
    %c0_59 = arith.constant 0 : index
    %184 = vector.load %arg2[%c1_57, %c0_58, %c0_59] : memref<2x32x128xbf16, #tpu.memory_space<vmem>>, vector<1x32x128xbf16>
    %185 = vector.shape_cast %184 : vector<1x32x128xbf16> to vector<32x128xbf16>
    %c1_60 = arith.constant 1 : index
    %c0_61 = arith.constant 0 : index
    %c0_62 = arith.constant 0 : index
    %186 = vector.load %arg3[%c1_60, %c0_61, %c0_62] : memref<2x1x128xf32, #tpu.memory_space<vmem>>, vector<1x1x128xf32>
    %187 = vector.shape_cast %186 : vector<1x1x128xf32> to vector<1x128xf32>
    %c0_63 = arith.constant 0 : index
    %c0_64 = arith.constant 0 : index
    %188 = vector.load %arg7[%c0_63, %c0_64] : memref<64x32xf32, #tpu.memory_space<vmem>>, vector<64x32xf32>
    %189 = arith.truncf %188 : vector<64x32xf32> to vector<64x32xbf16>
    %cst_65 = arith.constant dense<0.000000e+00> : vector<64x128xf32>
    %190 = tpu.matmul %189, %183, %cst_65 {dimension_numbers = #tpu.dot_dimension_numbers<[1], [0], [0], [1], [0, 0, 1, 1], [], []>} : vector<64x32xbf16>, vector<32x128xbf16>, vector<64x128xf32> -> vector<64x128xf32>
    %191 = vector.broadcast %187 : vector<1x128xf32> to vector<64x128xf32>
    %192 = arith.addf %190, %191 : vector<64x128xf32>
    %193 = arith.truncf %192 : vector<64x128xf32> to vector<64x128xbf16>
    %c0_66 = arith.constant 0 : index
    %c0_67 = arith.constant 0 : index
    %194 = vector.load %arg8[%c0_66, %c0_67] : memref<64x128xbf16, #tpu.memory_space<vmem>>, vector<64x128xbf16>
    tpu.vector_store %arg8[%c0_66, %c0_67], %193 {strides = array<i32>} : memref<64x128xbf16, #tpu.memory_space<vmem>>, vector<64x128xbf16>,
    %cst_68 = arith.constant 0.000000e+00 : f32
    %195 = vector.broadcast %cst_68 : f32 to vector<8x32xf32>
    %cst_69 = arith.constant 0.000000e+00 : f32
    %196 = vector.broadcast %cst_69 : f32 to vector<8x32xf32>
    %c0_70 = arith.constant 0 : index
    %c0_71 = arith.constant 0 : index
    %197 = vector.load %arg8[%c0_70, %c0_71] : memref<64x128xbf16, #tpu.memory_space<vmem>>, vector<8x128xbf16>
    %198 = arith.extf %197 : vector<8x128xbf16> to vector<8x128xf32>
    %199 = arith.truncf %195 : vector<8x32xf32> to vector<8x32xbf16>
    %cst_72 = arith.constant dense<0.000000e+00> : vector<8x128xf32>
    %200 = tpu.matmul %199, %185, %cst_72 {dimension_numbers = #tpu.dot_dimension_numbers<[1], [0], [0], [1], [0, 0, 1, 1], [], []>} : vector<8x32xbf16>, vector<32x128xbf16>, vector<8x128xf32> -> vector<8x128xf32>
    %201 = arith.addf %198, %200 : vector<8x128xf32>
    %202 = arith.negf %201 : vector<8x128xf32>
    %203 = math.exp %202 : vector<8x128xf32>
    %cst_73 = arith.constant 1.000000e+00 : f32
    %204 = vector.broadcast %cst_73 : f32 to vector<8x128xf32>
    %205 = arith.addf %204, %203 : vector<8x128xf32>
    %206 = arith.divf %204, %205 : vector<8x128xf32>
    %207 = math.tanh %201 : vector<8x128xf32>
    %208 = vector.extract_strided_slice %206 {offsets = [0, 0], sizes = [8, 32], strides = [1, 1]} : vector<8x128xf32> to vector<8x32xf32>
    %209 = vector.extract_strided_slice %206 {offsets = [0, 32], sizes = [8, 32], strides = [1, 1]} : vector<8x128xf32> to vector<8x32xf32>
    %210 = vector.extract_strided_slice %207 {offsets = [0, 64], sizes = [8, 32], strides = [1, 1]} : vector<8x128xf32> to vector<8x32xf32>
    %211 = vector.extract_strided_slice %206 {offsets = [0, 96], sizes = [8, 32], strides = [1, 1]} : vector<8x128xf32> to vector<8x32xf32>
    %212 = arith.mulf %209, %196 : vector<8x32xf32>
    %213 = arith.mulf %208, %210 : vector<8x32xf32>
    %214 = arith.addf %212, %213 : vector<8x32xf32>
    %215 = math.tanh %214 : vector<8x32xf32>
    %216 = arith.mulf %211, %215 : vector<8x32xf32>
    %c8_74 = arith.constant 8 : index
    %c0_75 = arith.constant 0 : index
    %217 = vector.load %arg8[%c8_74, %c0_75] : memref<64x128xbf16, #tpu.memory_space<vmem>>, vector<8x128xbf16>
    %218 = arith.extf %217 : vector<8x128xbf16> to vector<8x128xf32>
    %219 = arith.truncf %216 : vector<8x32xf32> to vector<8x32xbf16>
    %cst_76 = arith.constant dense<0.000000e+00> : vector<8x128xf32>
    %220 = tpu.matmul %219, %185, %cst_76 {dimension_numbers = #tpu.dot_dimension_numbers<[1], [0], [0], [1], [0, 0, 1, 1], [], []>} : vector<8x32xbf16>, vector<32x128xbf16>, vector<8x128xf32> -> vector<8x128xf32>
    %221 = arith.addf %218, %220 : vector<8x128xf32>
    %222 = arith.negf %221 : vector<8x128xf32>
    %223 = math.exp %222 : vector<8x128xf32>
    %cst_77 = arith.constant 1.000000e+00 : f32
    %224 = vector.broadcast %cst_77 : f32 to vector<8x128xf32>
    %225 = arith.addf %224, %223 : vector<8x128xf32>
    %226 = arith.divf %224, %225 : vector<8x128xf32>
    %227 = math.tanh %221 : vector<8x128xf32>
    %228 = vector.extract_strided_slice %226 {offsets = [0, 0], sizes = [8, 32], strides = [1, 1]} : vector<8x128xf32> to vector<8x32xf32>
    %229 = vector.extract_strided_slice %226 {offsets = [0, 32], sizes = [8, 32], strides = [1, 1]} : vector<8x128xf32> to vector<8x32xf32>
    %230 = vector.extract_strided_slice %227 {offsets = [0, 64], sizes = [8, 32], strides = [1, 1]} : vector<8x128xf32> to vector<8x32xf32>
    %231 = vector.extract_strided_slice %226 {offsets = [0, 96], sizes = [8, 32], strides = [1, 1]} : vector<8x128xf32> to vector<8x32xf32>
    %232 = arith.mulf %229, %214 : vector<8x32xf32>
    %233 = arith.mulf %228, %230 : vector<8x32xf32>
    %234 = arith.addf %232, %233 : vector<8x32xf32>
    %235 = math.tanh %234 : vector<8x32xf32>
    %236 = arith.mulf %231, %235 : vector<8x32xf32>
    %c16_78 = arith.constant 16 : index
    %c0_79 = arith.constant 0 : index
    %237 = vector.load %arg8[%c16_78, %c0_79] : memref<64x128xbf16, #tpu.memory_space<vmem>>, vector<8x128xbf16>
    %238 = arith.extf %237 : vector<8x128xbf16> to vector<8x128xf32>
    %239 = arith.truncf %236 : vector<8x32xf32> to vector<8x32xbf16>
    %cst_80 = arith.constant dense<0.000000e+00> : vector<8x128xf32>
    %240 = tpu.matmul %239, %185, %cst_80 {dimension_numbers = #tpu.dot_dimension_numbers<[1], [0], [0], [1], [0, 0, 1, 1], [], []>} : vector<8x32xbf16>, vector<32x128xbf16>, vector<8x128xf32> -> vector<8x128xf32>
    %241 = arith.addf %238, %240 : vector<8x128xf32>
    %242 = arith.negf %241 : vector<8x128xf32>
    %243 = math.exp %242 : vector<8x128xf32>
    %cst_81 = arith.constant 1.000000e+00 : f32
    %244 = vector.broadcast %cst_81 : f32 to vector<8x128xf32>
    %245 = arith.addf %244, %243 : vector<8x128xf32>
    %246 = arith.divf %244, %245 : vector<8x128xf32>
    %247 = math.tanh %241 : vector<8x128xf32>
    %248 = vector.extract_strided_slice %246 {offsets = [0, 0], sizes = [8, 32], strides = [1, 1]} : vector<8x128xf32> to vector<8x32xf32>
    %249 = vector.extract_strided_slice %246 {offsets = [0, 32], sizes = [8, 32], strides = [1, 1]} : vector<8x128xf32> to vector<8x32xf32>
    %250 = vector.extract_strided_slice %247 {offsets = [0, 64], sizes = [8, 32], strides = [1, 1]} : vector<8x128xf32> to vector<8x32xf32>
    %251 = vector.extract_strided_slice %246 {offsets = [0, 96], sizes = [8, 32], strides = [1, 1]} : vector<8x128xf32> to vector<8x32xf32>
    %252 = arith.mulf %249, %234 : vector<8x32xf32>
    %253 = arith.mulf %248, %250 : vector<8x32xf32>
    %254 = arith.addf %252, %253 : vector<8x32xf32>
    %255 = math.tanh %254 : vector<8x32xf32>
    %256 = arith.mulf %251, %255 : vector<8x32xf32>
    %c24_82 = arith.constant 24 : index
    %c0_83 = arith.constant 0 : index
    %257 = vector.load %arg8[%c24_82, %c0_83] : memref<64x128xbf16, #tpu.memory_space<vmem>>, vector<8x128xbf16>
    %258 = arith.extf %257 : vector<8x128xbf16> to vector<8x128xf32>
    %259 = arith.truncf %256 : vector<8x32xf32> to vector<8x32xbf16>
    %cst_84 = arith.constant dense<0.000000e+00> : vector<8x128xf32>
    %260 = tpu.matmul %259, %185, %cst_84 {dimension_numbers = #tpu.dot_dimension_numbers<[1], [0], [0], [1], [0, 0, 1, 1], [], []>} : vector<8x32xbf16>, vector<32x128xbf16>, vector<8x128xf32> -> vector<8x128xf32>
    %261 = arith.addf %258, %260 : vector<8x128xf32>
    %262 = arith.negf %261 : vector<8x128xf32>
    %263 = math.exp %262 : vector<8x128xf32>
    %cst_85 = arith.constant 1.000000e+00 : f32
    %264 = vector.broadcast %cst_85 : f32 to vector<8x128xf32>
    %265 = arith.addf %264, %263 : vector<8x128xf32>
    %266 = arith.divf %264, %265 : vector<8x128xf32>
    %267 = math.tanh %261 : vector<8x128xf32>
    %268 = vector.extract_strided_slice %266 {offsets = [0, 0], sizes = [8, 32], strides = [1, 1]} : vector<8x128xf32> to vector<8x32xf32>
    %269 = vector.extract_strided_slice %266 {offsets = [0, 32], sizes = [8, 32], strides = [1, 1]} : vector<8x128xf32> to vector<8x32xf32>
    %270 = vector.extract_strided_slice %267 {offsets = [0, 64], sizes = [8, 32], strides = [1, 1]} : vector<8x128xf32> to vector<8x32xf32>
    %271 = vector.extract_strided_slice %266 {offsets = [0, 96], sizes = [8, 32], strides = [1, 1]} : vector<8x128xf32> to vector<8x32xf32>
    %272 = arith.mulf %269, %254 : vector<8x32xf32>
    %273 = arith.mulf %268, %270 : vector<8x32xf32>
    %274 = arith.addf %272, %273 : vector<8x32xf32>
    %275 = math.tanh %274 : vector<8x32xf32>
    %276 = arith.mulf %271, %275 : vector<8x32xf32>
    %c32_86 = arith.constant 32 : index
    %c0_87 = arith.constant 0 : index
    %277 = vector.load %arg8[%c32_86, %c0_87] : memref<64x128xbf16, #tpu.memory_space<vmem>>, vector<8x128xbf16>
    %278 = arith.extf %277 : vector<8x128xbf16> to vector<8x128xf32>
    %279 = arith.truncf %276 : vector<8x32xf32> to vector<8x32xbf16>
    %cst_88 = arith.constant dense<0.000000e+00> : vector<8x128xf32>
    %280 = tpu.matmul %279, %185, %cst_88 {dimension_numbers = #tpu.dot_dimension_numbers<[1], [0], [0], [1], [0, 0, 1, 1], [], []>} : vector<8x32xbf16>, vector<32x128xbf16>, vector<8x128xf32> -> vector<8x128xf32>
    %281 = arith.addf %278, %280 : vector<8x128xf32>
    %282 = arith.negf %281 : vector<8x128xf32>
    %283 = math.exp %282 : vector<8x128xf32>
    %cst_89 = arith.constant 1.000000e+00 : f32
    %284 = vector.broadcast %cst_89 : f32 to vector<8x128xf32>
    %285 = arith.addf %284, %283 : vector<8x128xf32>
    %286 = arith.divf %284, %285 : vector<8x128xf32>
    %287 = math.tanh %281 : vector<8x128xf32>
    %288 = vector.extract_strided_slice %286 {offsets = [0, 0], sizes = [8, 32], strides = [1, 1]} : vector<8x128xf32> to vector<8x32xf32>
    %289 = vector.extract_strided_slice %286 {offsets = [0, 32], sizes = [8, 32], strides = [1, 1]} : vector<8x128xf32> to vector<8x32xf32>
    %290 = vector.extract_strided_slice %287 {offsets = [0, 64], sizes = [8, 32], strides = [1, 1]} : vector<8x128xf32> to vector<8x32xf32>
    %291 = vector.extract_strided_slice %286 {offsets = [0, 96], sizes = [8, 32], strides = [1, 1]} : vector<8x128xf32> to vector<8x32xf32>
    %292 = arith.mulf %289, %274 : vector<8x32xf32>
    %293 = arith.mulf %288, %290 : vector<8x32xf32>
    %294 = arith.addf %292, %293 : vector<8x32xf32>
    %295 = math.tanh %294 : vector<8x32xf32>
    %296 = arith.mulf %291, %295 : vector<8x32xf32>
    %c40_90 = arith.constant 40 : index
    %c0_91 = arith.constant 0 : index
    %297 = vector.load %arg8[%c40_90, %c0_91] : memref<64x128xbf16, #tpu.memory_space<vmem>>, vector<8x128xbf16>
    %298 = arith.extf %297 : vector<8x128xbf16> to vector<8x128xf32>
    %299 = arith.truncf %296 : vector<8x32xf32> to vector<8x32xbf16>
    %cst_92 = arith.constant dense<0.000000e+00> : vector<8x128xf32>
    %300 = tpu.matmul %299, %185, %cst_92 {dimension_numbers = #tpu.dot_dimension_numbers<[1], [0], [0], [1], [0, 0, 1, 1], [], []>} : vector<8x32xbf16>, vector<32x128xbf16>, vector<8x128xf32> -> vector<8x128xf32>
    %301 = arith.addf %298, %300 : vector<8x128xf32>
    %302 = arith.negf %301 : vector<8x128xf32>
    %303 = math.exp %302 : vector<8x128xf32>
    %cst_93 = arith.constant 1.000000e+00 : f32
    %304 = vector.broadcast %cst_93 : f32 to vector<8x128xf32>
    %305 = arith.addf %304, %303 : vector<8x128xf32>
    %306 = arith.divf %304, %305 : vector<8x128xf32>
    %307 = math.tanh %301 : vector<8x128xf32>
    %308 = vector.extract_strided_slice %306 {offsets = [0, 0], sizes = [8, 32], strides = [1, 1]} : vector<8x128xf32> to vector<8x32xf32>
    %309 = vector.extract_strided_slice %306 {offsets = [0, 32], sizes = [8, 32], strides = [1, 1]} : vector<8x128xf32> to vector<8x32xf32>
    %310 = vector.extract_strided_slice %307 {offsets = [0, 64], sizes = [8, 32], strides = [1, 1]} : vector<8x128xf32> to vector<8x32xf32>
    %311 = vector.extract_strided_slice %306 {offsets = [0, 96], sizes = [8, 32], strides = [1, 1]} : vector<8x128xf32> to vector<8x32xf32>
    %312 = arith.mulf %309, %294 : vector<8x32xf32>
    %313 = arith.mulf %308, %310 : vector<8x32xf32>
    %314 = arith.addf %312, %313 : vector<8x32xf32>
    %315 = math.tanh %314 : vector<8x32xf32>
    %316 = arith.mulf %311, %315 : vector<8x32xf32>
    %c48_94 = arith.constant 48 : index
    %c0_95 = arith.constant 0 : index
    %317 = vector.load %arg8[%c48_94, %c0_95] : memref<64x128xbf16, #tpu.memory_space<vmem>>, vector<8x128xbf16>
    %318 = arith.extf %317 : vector<8x128xbf16> to vector<8x128xf32>
    %319 = arith.truncf %316 : vector<8x32xf32> to vector<8x32xbf16>
    %cst_96 = arith.constant dense<0.000000e+00> : vector<8x128xf32>
    %320 = tpu.matmul %319, %185, %cst_96 {dimension_numbers = #tpu.dot_dimension_numbers<[1], [0], [0], [1], [0, 0, 1, 1], [], []>} : vector<8x32xbf16>, vector<32x128xbf16>, vector<8x128xf32> -> vector<8x128xf32>
    %321 = arith.addf %318, %320 : vector<8x128xf32>
    %322 = arith.negf %321 : vector<8x128xf32>
    %323 = math.exp %322 : vector<8x128xf32>
    %cst_97 = arith.constant 1.000000e+00 : f32
    %324 = vector.broadcast %cst_97 : f32 to vector<8x128xf32>
    %325 = arith.addf %324, %323 : vector<8x128xf32>
    %326 = arith.divf %324, %325 : vector<8x128xf32>
    %327 = math.tanh %321 : vector<8x128xf32>
    %328 = vector.extract_strided_slice %326 {offsets = [0, 0], sizes = [8, 32], strides = [1, 1]} : vector<8x128xf32> to vector<8x32xf32>
    %329 = vector.extract_strided_slice %326 {offsets = [0, 32], sizes = [8, 32], strides = [1, 1]} : vector<8x128xf32> to vector<8x32xf32>
    %330 = vector.extract_strided_slice %327 {offsets = [0, 64], sizes = [8, 32], strides = [1, 1]} : vector<8x128xf32> to vector<8x32xf32>
    %331 = vector.extract_strided_slice %326 {offsets = [0, 96], sizes = [8, 32], strides = [1, 1]} : vector<8x128xf32> to vector<8x32xf32>
    %332 = arith.mulf %329, %314 : vector<8x32xf32>
    %333 = arith.mulf %328, %330 : vector<8x32xf32>
    %334 = arith.addf %332, %333 : vector<8x32xf32>
    %335 = math.tanh %334 : vector<8x32xf32>
    %336 = arith.mulf %331, %335 : vector<8x32xf32>
    %c56_98 = arith.constant 56 : index
    %c0_99 = arith.constant 0 : index
    %337 = vector.load %arg8[%c56_98, %c0_99] : memref<64x128xbf16, #tpu.memory_space<vmem>>, vector<8x128xbf16>
    %338 = arith.extf %337 : vector<8x128xbf16> to vector<8x128xf32>
    %339 = arith.truncf %336 : vector<8x32xf32> to vector<8x32xbf16>
    %cst_100 = arith.constant dense<0.000000e+00> : vector<8x128xf32>
    %340 = tpu.matmul %339, %185, %cst_100 {dimension_numbers = #tpu.dot_dimension_numbers<[1], [0], [0], [1], [0, 0, 1, 1], [], []>} : vector<8x32xbf16>, vector<32x128xbf16>, vector<8x128xf32> -> vector<8x128xf32>
    %341 = arith.addf %338, %340 : vector<8x128xf32>
    %342 = arith.negf %341 : vector<8x128xf32>
    %343 = math.exp %342 : vector<8x128xf32>
    %cst_101 = arith.constant 1.000000e+00 : f32
    %344 = vector.broadcast %cst_101 : f32 to vector<8x128xf32>
    %345 = arith.addf %344, %343 : vector<8x128xf32>
    %346 = arith.divf %344, %345 : vector<8x128xf32>
    %347 = math.tanh %341 : vector<8x128xf32>
    %348 = vector.extract_strided_slice %346 {offsets = [0, 0], sizes = [8, 32], strides = [1, 1]} : vector<8x128xf32> to vector<8x32xf32>
    %349 = vector.extract_strided_slice %346 {offsets = [0, 32], sizes = [8, 32], strides = [1, 1]} : vector<8x128xf32> to vector<8x32xf32>
    %350 = vector.extract_strided_slice %347 {offsets = [0, 64], sizes = [8, 32], strides = [1, 1]} : vector<8x128xf32> to vector<8x32xf32>
    %351 = vector.extract_strided_slice %346 {offsets = [0, 96], sizes = [8, 32], strides = [1, 1]} : vector<8x128xf32> to vector<8x32xf32>
    %352 = arith.mulf %349, %334 : vector<8x32xf32>
    %353 = arith.mulf %348, %350 : vector<8x32xf32>
    %354 = arith.addf %352, %353 : vector<8x32xf32>
    %355 = math.tanh %354 : vector<8x32xf32>
    %356 = arith.mulf %351, %355 : vector<8x32xf32>
    %357 = arith.truncf %356 : vector<8x32xf32> to vector<8x32xbf16>
    %c0_102 = arith.constant 0 : index
    %c0_103 = arith.constant 0 : index
    %358 = vector.load %arg4[%c0_102, %c0_103] : memref<32x128xbf16, #tpu.memory_space<vmem>>, vector<32x128xbf16>
    %cst_104 = arith.constant dense<0.000000e+00> : vector<8x128xf32>
    %359 = tpu.matmul %357, %358, %cst_104 {dimension_numbers = #tpu.dot_dimension_numbers<[1], [0], [0], [1], [0, 0, 1, 1], [], []>} : vector<8x32xbf16>, vector<32x128xbf16>, vector<8x128xf32> -> vector<8x128xf32>
    %c0_105 = arith.constant 0 : index
    %c0_106 = arith.constant 0 : index
    %360 = vector.load %arg5[%c0_105, %c0_106] : memref<1x128xf32, #tpu.memory_space<vmem>>, vector<1x128xf32>
    %361 = vector.broadcast %360 : vector<1x128xf32> to vector<8x128xf32>
    %362 = arith.addf %359, %361 : vector<8x128xf32>
    %c0_107 = arith.constant 0 : index
    %c0_108 = arith.constant 0 : index
    %363 = vector.load %arg6[%c0_107, %c0_108] : memref<8x128xf32, #tpu.memory_space<vmem>>, vector<8x128xf32>
    tpu.vector_store %arg6[%c0_107, %c0_108], %362 {strides = array<i32>} : memref<8x128xf32, #tpu.memory_space<vmem>>, vector<8x128xf32>,
    return
  }
}

</mosaic_0001>

<llo_original>
// kernel: lstm_forward.1
$region0: #{lstm_forward.1}
  #allocation0 [shape = 'u32[]', space=smem, size = 0x4, offset = 0x4, fixed_abs, tag = 'smem constant byte address 0x4 - core index']
  #allocation1 [shape = 'u32[144,128]{1,0:T(1,128)}', space=vmem, size = 0x12000, scoped, tag = 'internal scratch']
  #allocation2 [shape = 'f32[64,32]{1,0:T(8,128)}', space=vmem, size = 0x8000, scoped, tag = 'scratch operand']
  #allocation3 [shape = 'bf16[64,128]{1,0:T(16,128)(2,1)}', space=vmem, size = 0x4000, scoped, tag = 'scratch operand']
  %s0 = inlined_call_operand.vmem [shape: bf16[64,32], index: 0, kind: input, shape index: {}]
  %s1 = inlined_call_operand.vmem [shape: bf16[2,32,128], index: 1, kind: input, shape index: {}]
  %s2 = inlined_call_operand.vmem [shape: bf16[2,32,128], index: 2, kind: input, shape index: {}]
  %s3 = inlined_call_operand.vmem [shape: f32[2,1,128], index: 3, kind: input, shape index: {}]
  %s4 = inlined_call_operand.vmem [shape: bf16[32,128], index: 4, kind: input, shape index: {}]
  %s5 = inlined_call_operand.vmem [shape: f32[1,128], index: 5, kind: input, shape index: {}]
  %s6 = inlined_call_operand.vmem [shape: f32[8,128], index: 6, kind: output, shape index: {}]
  %s7 = sld [smem:[#allocation0]]
  $region34: #{lstm_forward.1} parent=0
    _
  %s9 = ssub.s32 1, %s7
  %s10 = scalar_select 0, %s9, %s7
  // Predicated region
  $region2: #{lstm_forward.1} parent=0 // pred_check
    _
  $region3: #{lstm_forward.1} parent=0 // pred_check_branch
    %12 = sbr.rel (0) target = $region5
  $region4: #{lstm_forward.1} parent=0 // pred_region
    _
  $region5: #{lstm_forward.1} parent=0 // pred_fallthru
    _
  // Predicated region
  $region6: #{lstm_forward.1} parent=0 // pred_check
    _
  $region7: #{lstm_forward.1} parent=0 // pred_check_branch
    %14 = sbr.rel (0) target = $region9
  $region8: #{lstm_forward.1} parent=0 // pred_region
    _
  $region9: #{lstm_forward.1} parent=0 // pred_fallthru
    _
  // Predicated region
  $region10: #{lstm_forward.1} parent=0 // pred_check
    _
  $region11: #{lstm_forward.1} parent=0 // pred_check_branch
    %16 = sbr.rel (0) target = $region13
  $region12: #{lstm_forward.1} parent=0 // pred_region
    _
  $region13: #{lstm_forward.1} parent=0 // pred_fallthru
    _
  // Predicated region
  $region14: #{lstm_forward.1} parent=0 // pred_check
    _
  $region15: #{lstm_forward.1} parent=0 // pred_check_branch
    %18 = sbr.rel (0) target = $region17
  $region16: #{lstm_forward.1} parent=0 // pred_region
    _
  $region17: #{lstm_forward.1} parent=0 // pred_fallthru
    _
  // Predicated region
  $region18: #{lstm_forward.1} parent=0 // pred_check
    _
  $region19: #{lstm_forward.1} parent=0 // pred_check_branch
    %20 = sbr.rel (0) target = $region21
  $region20: #{lstm_forward.1} parent=0 // pred_region
    _
  $region21: #{lstm_forward.1} parent=0 // pred_fallthru
    _
  // Predicated region
  $region22: #{lstm_forward.1} parent=0 // pred_check
    _
  $region23: #{lstm_forward.1} parent=0 // pred_check_branch
    %22 = sbr.rel (0) target = $region25
  $region24: #{lstm_forward.1} parent=0 // pred_region
    _
  $region25: #{lstm_forward.1} parent=0 // pred_fallthru
    _
  %v24 = vld [vmem:[%s1] sm:$0xf]
  %v25 = vld [vmem:[%s1 + $0x4] sm:$0xf]
  %v26 = vld [vmem:[%s1 + $0x8] sm:$0xf]
  %v27 = vld [vmem:[%s1 + $0xc] sm:$0xf]
  %v28 = vld [vmem:[%s2] sm:$0xf]
  %v29 = vld [vmem:[%s2 + $0x4] sm:$0xf]
  %v30 = vld [vmem:[%s2 + $0x8] sm:$0xf]
  %v31 = vld [vmem:[%s2 + $0xc] sm:$0xf]
  %v32 = vld [vmem:[%s3] sm:$0x1]
  %v33 = vld [vmem:[%s0] sm:$0xf]
  %v34 = vld [vmem:[%s0 + $0x4] sm:$0xf]
  %v35 = vld [vmem:[%s0 + $0x8] sm:$0xf]
  %v36 = vld [vmem:[%s0 + $0xc] sm:$0xf]
  %v37 = vld [vmem:[%s0 + $0x10] sm:$0xf]
  %v38 = vld [vmem:[%s0 + $0x14] sm:$0xf]
  %v39 = vld [vmem:[%s0 + $0x18] sm:$0xf]
  %v40 = vld [vmem:[%s0 + $0x1c] sm:$0xf]
  %v42 = vlaneseq
  %v43 = vshrl.u32 %v42, 7
  %v44 = vsub.s32 0, %v43
  %v45 = vrot.slane %v32, %v44
  %v55 = vunpack.c.l.b16 %v33
  %v56 = vunpack.c.l.b16 %v34
  %v57 = vunpack.c.l.b16 %v35
  %v58 = vunpack.c.l.b16 %v36
  %v59 = vunpack.c.l.b16 %v37
  %v60 = vunpack.c.l.b16 %v38
  %v61 = vunpack.c.l.b16 %v39
  %v62 = vunpack.c.l.b16 %v40
  %v63 = vpack.c.b16 %v56, %v55
  %v64 = vpack.c.b16 %v58, %v57
  %v65 = vpack.c.b16 %v60, %v59
  %v66 = vpack.c.b16 %v62, %v61
  %v71 = vunpack.c.l.b16 %v24
  %v72 = vunpack.c.l.b16 %v25
  %v73 = vunpack.c.l.b16 %v26
  %v74 = vunpack.c.l.b16 %v27
  %v75 = vpack.c.b16 %v72, %v71
  %v76 = vpack.c.b16 %v74, %v73
  %vm79 = vcmask 261120
  %v81 = vsel %vm79, %v63, 0
  %v84 = vsel %vm79, %v64, 0
  %v87 = vsel %vm79, %v65, 0
  %v90 = vsel %vm79, %v66, 0
  %92 = vmatprep.subr.bf16.mxu0 0
  %93 = vmatpush1.bf16.msra.mxu0 %v75
  %94 = vmatprep.subr.bf16.mxu0 0
  %95 = vmatpush1.bf16.msra.mxu0 %v76
  %96 = vmatprep.subr.bf16.mxu0 0
  %97 = vmatpush1.bf16.msra.mxu0 0
  %98 = vmatprep.subr.bf16.mxu0 0
  %99 = vmatpush1.bf16.msra.mxu0 0
  %100 = vmatprep.subr.bf16.mxu0 0
  %101 = vmatpush1.bf16.msra.mxu0 0
  %102 = vmatprep.subr.bf16.mxu0 0
  %103 = vmatpush1.bf16.msra.mxu0 0
  %104 = vmatprep.subr.bf16.mxu0 0
  %105 = vmatpush1.bf16.msra.mxu0 0
  %106 = vmatprep.subr.bf16.mxu0 0
  %107 = vmatpush1.bf16.msra.mxu0 0
  %108 = vmatprep.subr.bf16.mxu0 0
  %109 = vmatpush1.bf16.msra.mxu0 0
  %110 = vmatprep.subr.bf16.mxu0 0
  %111 = vmatpush1.bf16.msra.mxu0 0
  %112 = vmatprep.subr.bf16.mxu0 0
  %113 = vmatpush1.bf16.msra.mxu0 0
  %114 = vmatprep.subr.bf16.mxu0 0
  %115 = vmatpush1.bf16.msra.mxu0 0
  %116 = vmatprep.subr.bf16.mxu0 0
  %117 = vmatpush1.bf16.msra.mxu0 0
  %118 = vmatprep.subr.bf16.mxu0 0
  %119 = vmatpush1.bf16.msra.mxu0 0
  %120 = vmatprep.subr.bf16.mxu0 0
  %121 = vmatpush1.bf16.msra.mxu0 0
  %122 = vmatprep.subr.bf16.mxu0 0
  %123 = vmatpush1.bf16.msra.mxu0 0
  %124 = vmatprep.mubr.bf16.mxu0 0
  %125 = vmatmul.mubr.bf16.gmra.mrb[0].mxu0 %v81
  %v126 = vpop.f32.mrb[0].mxu0
  %v127 = vadd.f32 %v45, %v126
  %v128 = vpop.f32.mrb[0].mxu0
  %v129 = vpop.f32.mrb[0].mxu0
  %v130 = vadd.f32 %v45, %v129
  %v131 = vpop.f32.mrb[0].mxu0
  %132 = vmatprep.mubr.bf16.mxu0 0
  %133 = vmatmul.mubr.bf16.gmra.mrb[0].mxu0 %v84
  %v134 = vpop.f32.mrb[0].mxu0
  %v135 = vadd.f32 %v45, %v134
  %v136 = vpop.f32.mrb[0].mxu0
  %v137 = vpop.f32.mrb[0].mxu0
  %v138 = vadd.f32 %v45, %v137
  %v139 = vpop.f32.mrb[0].mxu0
  %140 = vmatprep.mubr.bf16.mxu0 0
  %141 = vmatmul.mubr.bf16.gmra.mrb[0].mxu0 %v87
  %v142 = vpop.f32.mrb[0].mxu0
  %v143 = vadd.f32 %v45, %v142
  %v144 = vpop.f32.mrb[0].mxu0
  %v145 = vpop.f32.mrb[0].mxu0
  %v146 = vadd.f32 %v45, %v145
  %v147 = vpop.f32.mrb[0].mxu0
  %148 = vmatprep.mubr.bf16.mxu0 0
  %149 = vmatmul.mubr.bf16.gmra.mrb[0].mxu0 %v90
  %v150 = vpop.f32.mrb[0].mxu0
  %v151 = vadd.f32 %v45, %v150
  %v152 = vpop.f32.mrb[0].mxu0
  %v153 = vpop.f32.mrb[0].mxu0
  %v154 = vadd.f32 %v45, %v153
  %v155 = vpop.f32.mrb[0].mxu0
  %156 = vdwg.mxu0
  %v157 = vpack.c.bf16 %v130, %v127
  %v158 = vpack.c.bf16 %v138, %v135
  %v159 = vpack.c.bf16 %v146, %v143
  %v160 = vpack.c.bf16 %v154, %v151
  %161 = vst [vmem:[#allocation3] sm:$0xff] %v157
  %162 = vst [vmem:[#allocation3 + $0x8] sm:$0xff] %v158
  %163 = vst [vmem:[#allocation3 + $0x10] sm:$0xff] %v159
  %164 = vst [vmem:[#allocation3 + $0x18] sm:$0xff] %v160
  %v165 = vld [vmem:[#allocation3] sm:$0xf]
  %v166 = vunpack.c.l.bf16 %v165
  %v171 = vunpack.c.l.b16 %v28
  %v172 = vunpack.c.l.b16 %v29
  %v173 = vunpack.c.l.b16 %v30
  %v174 = vunpack.c.l.b16 %v31
  %v175 = vpack.c.b16 %v172, %v171
  %v176 = vpack.c.b16 %v174, %v173
  %v180 = vsel %vm79, 0, 0
  %182 = vmatprep.subr.bf16.mxu0 0
  %183 = vmatpush1.bf16.msra.mxu0 %v175
  %184 = vmatprep.subr.bf16.mxu0 0
  %185 = vmatpush1.bf16.msra.mxu0 %v176
  %186 = vmatprep.subr.bf16.mxu0 0
  %187 = vmatpush1.bf16.msra.mxu0 0
  %188 = vmatprep.subr.bf16.mxu0 0
  %189 = vmatpush1.bf16.msra.mxu0 0
  %190 = vmatprep.subr.bf16.mxu0 0
  %191 = vmatpush1.bf16.msra.mxu0 0
  %192 = vmatprep.subr.bf16.mxu0 0
  %193 = vmatpush1.bf16.msra.mxu0 0
  %194 = vmatprep.subr.bf16.mxu0 0
  %195 = vmatpush1.bf16.msra.mxu0 0
  %196 = vmatprep.subr.bf16.mxu0 0
  %197 = vmatpush1.bf16.msra.mxu0 0
  %198 = vmatprep.subr.bf16.mxu0 0
  %199 = vmatpush1.bf16.msra.mxu0 0
  %200 = vmatprep.subr.bf16.mxu0 0
  %201 = vmatpush1.bf16.msra.mxu0 0
  %202 = vmatprep.subr.bf16.mxu0 0
  %203 = vmatpush1.bf16.msra.mxu0 0
  %204 = vmatprep.subr.bf16.mxu0 0
  %205 = vmatpush1.bf16.msra.mxu0 0
  %206 = vmatprep.subr.bf16.mxu0 0
  %207 = vmatpush1.bf16.msra.mxu0 0
  %208 = vmatprep.subr.bf16.mxu0 0
  %209 = vmatpush1.bf16.msra.mxu0 0
  %210 = vmatprep.subr.bf16.mxu0 0
  %211 = vmatpush1.bf16.msra.mxu0 0
  %212 = vmatprep.subr.bf16.mxu0 0
  %213 = vmatpush1.bf16.msra.mxu0 0
  %214 = vmatprep.mubr.bf16.mxu0 0
  %215 = vmatmul.mubr.bf16.gmra.mrb[0].mxu0 %v180
  %v216 = vpop.f32.mrb[0].mxu0
  %v217 = vadd.f32 0.0, %v216
  %v218 = vpop.f32.mrb[0].mxu0
  %v219 = vpop.f32.mrb[0].mxu0
  %v220 = vpop.f32.mrb[0].mxu0
  %221 = vdwg.mxu0
  %v222 = vadd.f32 %v166, %v217
  %v223 = vxor.u32 %v222, 2147483648
  %v224 = vmul.f32 %v223, 1.442695
  %v225 = vpow.pop %v224
  %v226 = vadd.f32 %v225, 1.0
  %v227 = vrcp.pop %v226
  %v228 = vmul.f32 1.0, %v227
  %v229 = vtanh.pop %v222
  %v230 = vmul.f32 %v228, 0.0
  %232 = vrot.lane.b32.xlu0 %v229, 64
  %v233 = vpop.permute.xlu0 %232
  %v235 = vmul.f32 %v228, %v233
  %237 = vrot.lane.b32.xlu0 %v235, 32
  %v238 = vpop.permute.xlu0 %237
  %v240 = vadd.f32 %v230, %v238
  %v241 = vtanh.pop %v240
  %243 = vrot.lane.b32.xlu0 %v241, 64
  %v244 = vpop.permute.xlu0 %243
  %v246 = vmul.f32 %v228, %v244
  %248 = vrot.lane.b32.xlu0 %v246, 32
  %v249 = vpop.permute.xlu0 %248
  %251 = vst.msk [vmem:[#allocation2] sm:$0xff] %vm79, %v249
  %v252 = vld [vmem:[#allocation3] sm:$0xf0]
  %v254 = vrot.slane %v252, 4
  %v256 = vunpack.c.l.bf16 %v254
  %v257 = vpack.c.bf16 %v246, %v246
  %259 = vrot.lane.b32.xlu0 %v257, 32
  %v260 = vpop.permute.xlu0 %259
  %v262 = vsel %vm79, %v260, 0
  %264 = vmatprep.subr.bf16.mxu0 0
  %265 = vmatpush1.bf16.msra.mxu0 %v175
  %266 = vmatprep.subr.bf16.mxu0 0
  %267 = vmatpush1.bf16.msra.mxu0 %v176
  %268 = vmatprep.subr.bf16.mxu0 0
  %269 = vmatpush1.bf16.msra.mxu0 0
  %270 = vmatprep.subr.bf16.mxu0 0
  %271 = vmatpush1.bf16.msra.mxu0 0
  %272 = vmatprep.subr.bf16.mxu0 0
  %273 = vmatpush1.bf16.msra.mxu0 0
  %274 = vmatprep.subr.bf16.mxu0 0
  %275 = vmatpush1.bf16.msra.mxu0 0
  %276 = vmatprep.subr.bf16.mxu0 0
  %277 = vmatpush1.bf16.msra.mxu0 0
  %278 = vmatprep.subr.bf16.mxu0 0
  %279 = vmatpush1.bf16.msra.mxu0 0
  %280 = vmatprep.subr.bf16.mxu0 0
  %281 = vmatpush1.bf16.msra.mxu0 0
  %282 = vmatprep.subr.bf16.mxu0 0
  %283 = vmatpush1.bf16.msra.mxu0 0
  %284 = vmatprep.subr.bf16.mxu0 0
  %285 = vmatpush1.bf16.msra.mxu0 0
  %286 = vmatprep.subr.bf16.mxu0 0
  %287 = vmatpush1.bf16.msra.mxu0 0
  %288 = vmatprep.subr.bf16.mxu0 0
  %289 = vmatpush1.bf16.msra.mxu0 0
  %290 = vmatprep.subr.bf16.mxu0 0
  %291 = vmatpush1.bf16.msra.mxu0 0
  %292 = vmatprep.subr.bf16.mxu0 0
  %293 = vmatpush1.bf16.msra.mxu0 0
  %294 = vmatprep.subr.bf16.mxu0 0
  %295 = vmatpush1.bf16.msra.mxu0 0
  %296 = vmatprep.mubr.bf16.mxu0 0
  %297 = vmatmul.mubr.bf16.gmra.mrb[0].mxu0 %v262
  %v298 = vpop.f32.mrb[0].mxu0
  %v299 = vadd.f32 0.0, %v298
  %v300 = vpop.f32.mrb[0].mxu0
  %v301 = vpop.f32.mrb[0].mxu0
  %v302 = vpop.f32.mrb[0].mxu0
  %303 = vdwg.mxu0
  %v304 = vadd.f32 %v256, %v299
  %v305 = vxor.u32 %v304, 2147483648
  %v306 = vmul.f32 %v305, 1.442695
  %v307 = vpow.pop %v306
  %v308 = vadd.f32 %v307, 1.0
  %v309 = vrcp.pop %v308
  %v310 = vmul.f32 1.0, %v309
  %v311 = vtanh.pop %v304
  %v312 = vmul.f32 %v310, %v240
  %314 = vrot.lane.b32.xlu0 %v311, 64
  %v315 = vpop.permute.xlu0 %314
  %v317 = vmul.f32 %v310, %v315
  %319 = vrot.lane.b32.xlu0 %v317, 32
  %v320 = vpop.permute.xlu0 %319
  %v322 = vadd.f32 %v312, %v320
  %v323 = vtanh.pop %v322
  %325 = vrot.lane.b32.xlu0 %v323, 64
  %v326 = vpop.permute.xlu0 %325
  %v328 = vmul.f32 %v310, %v326
  %330 = vrot.lane.b32.xlu0 %v328, 32
  %v331 = vpop.permute.xlu0 %330
  %333 = vst.msk [vmem:[#allocation2 + $0x8] sm:$0xff] %vm79, %v331
  %v334 = vld [vmem:[#allocation3 + $0x8] sm:$0xf]
  %v335 = vunpack.c.l.bf16 %v334
  %v336 = vpack.c.bf16 %v328, %v328
  %338 = vrot.lane.b32.xlu0 %v336, 32
  %v339 = vpop.permute.xlu0 %338
  %v341 = vsel %vm79, %v339, 0
  %343 = vmatprep.subr.bf16.mxu0 0
  %344 = vmatpush1.bf16.msra.mxu0 %v175
  %345 = vmatprep.subr.bf16.mxu0 0
  %346 = vmatpush1.bf16.msra.mxu0 %v176
  %347 = vmatprep.subr.bf16.mxu0 0
  %348 = vmatpush1.bf16.msra.mxu0 0
  %349 = vmatprep.subr.bf16.mxu0 0
  %350 = vmatpush1.bf16.msra.mxu0 0
  %351 = vmatprep.subr.bf16.mxu0 0
  %352 = vmatpush1.bf16.msra.mxu0 0
  %353 = vmatprep.subr.bf16.mxu0 0
  %354 = vmatpush1.bf16.msra.mxu0 0
  %355 = vmatprep.subr.bf16.mxu0 0
  %356 = vmatpush1.bf16.msra.mxu0 0
  %357 = vmatprep.subr.bf16.mxu0 0
  %358 = vmatpush1.bf16.msra.mxu0 0
  %359 = vmatprep.subr.bf16.mxu0 0
  %360 = vmatpush1.bf16.msra.mxu0 0
  %361 = vmatprep.subr.bf16.mxu0 0
  %362 = vmatpush1.bf16.msra.mxu0 0
  %363 = vmatprep.subr.bf16.mxu0 0
  %364 = vmatpush1.bf16.msra.mxu0 0
  %365 = vmatprep.subr.bf16.mxu0 0
  %366 = vmatpush1.bf16.msra.mxu0 0
  %367 = vmatprep.subr.bf16.mxu0 0
  %368 = vmatpush1.bf16.msra.mxu0 0
  %369 = vmatprep.subr.bf16.mxu0 0
  %370 = vmatpush1.bf16.msra.mxu0 0
  %371 = vmatprep.subr.bf16.mxu0 0
  %372 = vmatpush1.bf16.msra.mxu0 0
  %373 = vmatprep.subr.bf16.mxu0 0
  %374 = vmatpush1.bf16.msra.mxu0 0
  %375 = vmatprep.mubr.bf16.mxu0 0
  %376 = vmatmul.mubr.bf16.gmra.mrb[0].mxu0 %v341
  %v377 = vpop.f32.mrb[0].mxu0
  %v378 = vadd.f32 0.0, %v377
  %v379 = vpop.f32.mrb[0].mxu0
  %v380 = vpop.f32.mrb[0].mxu0
  %v381 = vpop.f32.mrb[0].mxu0
  %382 = vdwg.mxu0
  %v383 = vadd.f32 %v335, %v378
  %v384 = vxor.u32 %v383, 2147483648
  %v385 = vmul.f32 %v384, 1.442695
  %v386 = vpow.pop %v385
  %v387 = vadd.f32 %v386, 1.0
  %v388 = vrcp.pop %v387
  %v389 = vmul.f32 1.0, %v388
  %v390 = vtanh.pop %v383
  %v391 = vmul.f32 %v389, %v322
  %393 = vrot.lane.b32.xlu0 %v390, 64
  %v394 = vpop.permute.xlu0 %393
  %v396 = vmul.f32 %v389, %v394
  %398 = vrot.lane.b32.xlu0 %v396, 32
  %v399 = vpop.permute.xlu0 %398
  %v401 = vadd.f32 %v391, %v399
  %v402 = vtanh.pop %v401
  %404 = vrot.lane.b32.xlu0 %v402, 64
  %v405 = vpop.permute.xlu0 %404
  %v407 = vmul.f32 %v389, %v405
  %409 = vrot.lane.b32.xlu0 %v407, 32
  %v410 = vpop.permute.xlu0 %409
  %412 = vst.msk [vmem:[#allocation2 + $0x10] sm:$0xff] %vm79, %v410
  %v413 = vld [vmem:[#allocation3 + $0x8] sm:$0xf0]
  %v415 = vrot.slane %v413, 4
  %v417 = vunpack.c.l.bf16 %v415
  %v418 = vpack.c.bf16 %v407, %v407
  %420 = vrot.lane.b32.xlu0 %v418, 32
  %v421 = vpop.permute.xlu0 %420
  %v423 = vsel %vm79, %v421, 0
  %425 = vmatprep.subr.bf16.mxu0 0
  %426 = vmatpush1.bf16.msra.mxu0 %v175
  %427 = vmatprep.subr.bf16.mxu0 0
  %428 = vmatpush1.bf16.msra.mxu0 %v176
  %429 = vmatprep.subr.bf16.mxu0 0
  %430 = vmatpush1.bf16.msra.mxu0 0
  %431 = vmatprep.subr.bf16.mxu0 0
  %432 = vmatpush1.bf16.msra.mxu0 0
  %433 = vmatprep.subr.bf16.mxu0 0
  %434 = vmatpush1.bf16.msra.mxu0 0
  %435 = vmatprep.subr.bf16.mxu0 0
  %436 = vmatpush1.bf16.msra.mxu0 0
  %437 = vmatprep.subr.bf16.mxu0 0
  %438 = vmatpush1.bf16.msra.mxu0 0
  %439 = vmatprep.subr.bf16.mxu0 0
  %440 = vmatpush1.bf16.msra.mxu0 0
  %441 = vmatprep.subr.bf16.mxu0 0
  %442 = vmatpush1.bf16.msra.mxu0 0
  %443 = vmatprep.subr.bf16.mxu0 0
  %444 = vmatpush1.bf16.msra.mxu0 0
  %445 = vmatprep.subr.bf16.mxu0 0
  %446 = vmatpush1.bf16.msra.mxu0 0
  %447 = vmatprep.subr.bf16.mxu0 0
  %448 = vmatpush1.bf16.msra.mxu0 0
  %449 = vmatprep.subr.bf16.mxu0 0
  %450 = vmatpush1.bf16.msra.mxu0 0
  %451 = vmatprep.subr.bf16.mxu0 0
  %452 = vmatpush1.bf16.msra.mxu0 0
  %453 = vmatprep.subr.bf16.mxu0 0
  %454 = vmatpush1.bf16.msra.mxu0 0
  %455 = vmatprep.subr.bf16.mxu0 0
  %456 = vmatpush1.bf16.msra.mxu0 0
  %457 = vmatprep.mubr.bf16.mxu0 0
  %458 = vmatmul.mubr.bf16.gmra.mrb[0].mxu0 %v423
  %v459 = vpop.f32.mrb[0].mxu0
  %v460 = vadd.f32 0.0, %v459
  %v461 = vpop.f32.mrb[0].mxu0
  %v462 = vpop.f32.mrb[0].mxu0
  %v463 = vpop.f32.mrb[0].mxu0
  %464 = vdwg.mxu0
  %v465 = vadd.f32 %v417, %v460
  %v466 = vxor.u32 %v465, 2147483648
  %v467 = vmul.f32 %v466, 1.442695
  %v468 = vpow.pop %v467
  %v469 = vadd.f32 %v468, 1.0
  %v470 = vrcp.pop %v469
  %v471 = vmul.f32 1.0, %v470
  %v472 = vtanh.pop %v465
  %v473 = vmul.f32 %v471, %v401
  %475 = vrot.lane.b32.xlu0 %v472, 64
  %v476 = vpop.permute.xlu0 %475
  %v478 = vmul.f32 %v471, %v476
  %480 = vrot.lane.b32.xlu0 %v478, 32
  %v481 = vpop.permute.xlu0 %480
  %v483 = vadd.f32 %v473, %v481
  %v484 = vtanh.pop %v483
  %486 = vrot.lane.b32.xlu0 %v484, 64
  %v487 = vpop.permute.xlu0 %486
  %v489 = vmul.f32 %v471, %v487
  %491 = vrot.lane.b32.xlu0 %v489, 32
  %v492 = vpop.permute.xlu0 %491
  %494 = vst.msk [vmem:[#allocation2 + $0x18] sm:$0xff] %vm79, %v492
  %v495 = vld [vmem:[#allocation3 + $0x10] sm:$0xf]
  %v496 = vunpack.c.l.bf16 %v495
  %v497 = vpack.c.bf16 %v489, %v489
  %499 = vrot.lane.b32.xlu0 %v497, 32
  %v500 = vpop.permute.xlu0 %499
  %v502 = vsel %vm79, %v500, 0
  %504 = vmatprep.subr.bf16.mxu0 0
  %505 = vmatpush1.bf16.msra.mxu0 %v175
  %506 = vmatprep.subr.bf16.mxu0 0
  %507 = vmatpush1.bf16.msra.mxu0 %v176
  %508 = vmatprep.subr.bf16.mxu0 0
  %509 = vmatpush1.bf16.msra.mxu0 0
  %510 = vmatprep.subr.bf16.mxu0 0
  %511 = vmatpush1.bf16.msra.mxu0 0
  %512 = vmatprep.subr.bf16.mxu0 0
  %513 = vmatpush1.bf16.msra.mxu0 0
  %514 = vmatprep.subr.bf16.mxu0 0
  %515 = vmatpush1.bf16.msra.mxu0 0
  %516 = vmatprep.subr.bf16.mxu0 0
  %517 = vmatpush1.bf16.msra.mxu0 0
  %518 = vmatprep.subr.bf16.mxu0 0
  %519 = vmatpush1.bf16.msra.mxu0 0
  %520 = vmatprep.subr.bf16.mxu0 0
  %521 = vmatpush1.bf16.msra.mxu0 0
  %522 = vmatprep.subr.bf16.mxu0 0
  %523 = vmatpush1.bf16.msra.mxu0 0
  %524 = vmatprep.subr.bf16.mxu0 0
  %525 = vmatpush1.bf16.msra.mxu0 0
  %526 = vmatprep.subr.bf16.mxu0 0
  %527 = vmatpush1.bf16.msra.mxu0 0
  %528 = vmatprep.subr.bf16.mxu0 0
  %529 = vmatpush1.bf16.msra.mxu0 0
  %530 = vmatprep.subr.bf16.mxu0 0
  %531 = vmatpush1.bf16.msra.mxu0 0
  %532 = vmatprep.subr.bf16.mxu0 0
  %533 = vmatpush1.bf16.msra.mxu0 0
  %534 = vmatprep.subr.bf16.mxu0 0
  %535 = vmatpush1.bf16.msra.mxu0 0
  %536 = vmatprep.mubr.bf16.mxu0 0
  %537 = vmatmul.mubr.bf16.gmra.mrb[0].mxu0 %v502
  %v538 = vpop.f32.mrb[0].mxu0
  %v539 = vadd.f32 0.0, %v538
  %v540 = vpop.f32.mrb[0].mxu0
  %v541 = vpop.f32.mrb[0].mxu0
  %v542 = vpop.f32.mrb[0].mxu0
  %543 = vdwg.mxu0
  %v544 = vadd.f32 %v496, %v539
  %v545 = vxor.u32 %v544, 2147483648
  %v546 = vmul.f32 %v545, 1.442695
  %v547 = vpow.pop %v546
  %v548 = vadd.f32 %v547, 1.0
  %v549 = vrcp.pop %v548
  %v550 = vmul.f32 1.0, %v549
  %v551 = vtanh.pop %v544
  %v552 = vmul.f32 %v550, %v483
  %554 = vrot.lane.b32.xlu0 %v551, 64
  %v555 = vpop.permute.xlu0 %554
  %v557 = vmul.f32 %v550, %v555
  %559 = vrot.lane.b32.xlu0 %v557, 32
  %v560 = vpop.permute.xlu0 %559
  %v562 = vadd.f32 %v552, %v560
  %v563 = vtanh.pop %v562
  %565 = vrot.lane.b32.xlu0 %v563, 64
  %v566 = vpop.permute.xlu0 %565
  %v568 = vmul.f32 %v550, %v566
  %570 = vrot.lane.b32.xlu0 %v568, 32
  %v571 = vpop.permute.xlu0 %570
  %573 = vst.msk [vmem:[#allocation2 + $0x20] sm:$0xff] %vm79, %v571
  %v574 = vld [vmem:[#allocation3 + $0x10] sm:$0xf0]
  %v576 = vrot.slane %v574, 4
  %v578 = vunpack.c.l.bf16 %v576
  %v579 = vpack.c.bf16 %v568, %v568
  %581 = vrot.lane.b32.xlu0 %v579, 32
  %v582 = vpop.permute.xlu0 %581
  %v584 = vsel %vm79, %v582, 0
  %586 = vmatprep.subr.bf16.mxu0 0
  %587 = vmatpush1.bf16.msra.mxu0 %v175
  %588 = vmatprep.subr.bf16.mxu0 0
  %589 = vmatpush1.bf16.msra.mxu0 %v176
  %590 = vmatprep.subr.bf16.mxu0 0
  %591 = vmatpush1.bf16.msra.mxu0 0
  %592 = vmatprep.subr.bf16.mxu0 0
  %593 = vmatpush1.bf16.msra.mxu0 0
  %594 = vmatprep.subr.bf16.mxu0 0
  %595 = vmatpush1.bf16.msra.mxu0 0
  %596 = vmatprep.subr.bf16.mxu0 0
  %597 = vmatpush1.bf16.msra.mxu0 0
  %598 = vmatprep.subr.bf16.mxu0 0
  %599 = vmatpush1.bf16.msra.mxu0 0
  %600 = vmatprep.subr.bf16.mxu0 0
  %601 = vmatpush1.bf16.msra.mxu0 0
  %602 = vmatprep.subr.bf16.mxu0 0
  %603 = vmatpush1.bf16.msra.mxu0 0
  %604 = vmatprep.subr.bf16.mxu0 0
  %605 = vmatpush1.bf16.msra.mxu0 0
  %606 = vmatprep.subr.bf16.mxu0 0
  %607 = vmatpush1.bf16.msra.mxu0 0
  %608 = vmatprep.subr.bf16.mxu0 0
  %609 = vmatpush1.bf16.msra.mxu0 0
  %610 = vmatprep.subr.bf16.mxu0 0
  %611 = vmatpush1.bf16.msra.mxu0 0
  %612 = vmatprep.subr.bf16.mxu0 0
  %613 = vmatpush1.bf16.msra.mxu0 0
  %614 = vmatprep.subr.bf16.mxu0 0
  %615 = vmatpush1.bf16.msra.mxu0 0
  %616 = vmatprep.subr.bf16.mxu0 0
  %617 = vmatpush1.bf16.msra.mxu0 0
  %618 = vmatprep.mubr.bf16.mxu0 0
  %619 = vmatmul.mubr.bf16.gmra.mrb[0].mxu0 %v584
  %v620 = vpop.f32.mrb[0].mxu0
  %v621 = vadd.f32 0.0, %v620
  %v622 = vpop.f32.mrb[0].mxu0
  %v623 = vpop.f32.mrb[0].mxu0
  %v624 = vpop.f32.mrb[0].mxu0
  %625 = vdwg.mxu0
  %v626 = vadd.f32 %v578, %v621
  %v627 = vxor.u32 %v626, 2147483648
  %v628 = vmul.f32 %v627, 1.442695
  %v629 = vpow.pop %v628
  %v630 = vadd.f32 %v629, 1.0
  %v631 = vrcp.pop %v630
  %v632 = vmul.f32 1.0, %v631
  %v633 = vtanh.pop %v626
  %v634 = vmul.f32 %v632, %v562
  %636 = vrot.lane.b32.xlu0 %v633, 64
  %v637 = vpop.permute.xlu0 %636
  %v639 = vmul.f32 %v632, %v637
  %641 = vrot.lane.b32.xlu0 %v639, 32
  %v642 = vpop.permute.xlu0 %641
  %v644 = vadd.f32 %v634, %v642
  %v645 = vtanh.pop %v644
  %647 = vrot.lane.b32.xlu0 %v645, 64
  %v648 = vpop.permute.xlu0 %647
  %v650 = vmul.f32 %v632, %v648
  %652 = vrot.lane.b32.xlu0 %v650, 32
  %v653 = vpop.permute.xlu0 %652
  %655 = vst.msk [vmem:[#allocation2 + $0x28] sm:$0xff] %vm79, %v653
  %v656 = vld [vmem:[#allocation3 + $0x18] sm:$0xf]
  %v657 = vunpack.c.l.bf16 %v656
  %v658 = vpack.c.bf16 %v650, %v650
  %660 = vrot.lane.b32.xlu0 %v658, 32
  %v661 = vpop.permute.xlu0 %660
  %v663 = vsel %vm79, %v661, 0
  %665 = vmatprep.subr.bf16.mxu0 0
  %666 = vmatpush1.bf16.msra.mxu0 %v175
  %667 = vmatprep.subr.bf16.mxu0 0
  %668 = vmatpush1.bf16.msra.mxu0 %v176
  %669 = vmatprep.subr.bf16.mxu0 0
  %670 = vmatpush1.bf16.msra.mxu0 0
  %671 = vmatprep.subr.bf16.mxu0 0
  %672 = vmatpush1.bf16.msra.mxu0 0
  %673 = vmatprep.subr.bf16.mxu0 0
  %674 = vmatpush1.bf16.msra.mxu0 0
  %675 = vmatprep.subr.bf16.mxu0 0
  %676 = vmatpush1.bf16.msra.mxu0 0
  %677 = vmatprep.subr.bf16.mxu0 0
  %678 = vmatpush1.bf16.msra.mxu0 0
  %679 = vmatprep.subr.bf16.mxu0 0
  %680 = vmatpush1.bf16.msra.mxu0 0
  %681 = vmatprep.subr.bf16.mxu0 0
  %682 = vmatpush1.bf16.msra.mxu0 0
  %683 = vmatprep.subr.bf16.mxu0 0
  %684 = vmatpush1.bf16.msra.mxu0 0
  %685 = vmatprep.subr.bf16.mxu0 0
  %686 = vmatpush1.bf16.msra.mxu0 0
  %687 = vmatprep.subr.bf16.mxu0 0
  %688 = vmatpush1.bf16.msra.mxu0 0
  %689 = vmatprep.subr.bf16.mxu0 0
  %690 = vmatpush1.bf16.msra.mxu0 0
  %691 = vmatprep.subr.bf16.mxu0 0
  %692 = vmatpush1.bf16.msra.mxu0 0
  %693 = vmatprep.subr.bf16.mxu0 0
  %694 = vmatpush1.bf16.msra.mxu0 0
  %695 = vmatprep.subr.bf16.mxu0 0
  %696 = vmatpush1.bf16.msra.mxu0 0
  %697 = vmatprep.mubr.bf16.mxu0 0
  %698 = vmatmul.mubr.bf16.gmra.mrb[0].mxu0 %v663
  %v699 = vpop.f32.mrb[0].mxu0
  %v700 = vadd.f32 0.0, %v699
  %v701 = vpop.f32.mrb[0].mxu0
  %v702 = vpop.f32.mrb[0].mxu0
  %v703 = vpop.f32.mrb[0].mxu0
  %704 = vdwg.mxu0
  %v705 = vadd.f32 %v657, %v700
  %v706 = vxor.u32 %v705, 2147483648
  %v707 = vmul.f32 %v706, 1.442695
  %v708 = vpow.pop %v707
  %v709 = vadd.f32 %v708, 1.0
  %v710 = vrcp.pop %v709
  %v711 = vmul.f32 1.0, %v710
  %v712 = vtanh.pop %v705
  %v713 = vmul.f32 %v711, %v644
  %715 = vrot.lane.b32.xlu0 %v712, 64
  %v716 = vpop.permute.xlu0 %715
  %v718 = vmul.f32 %v711, %v716
  %720 = vrot.lane.b32.xlu0 %v718, 32
  %v721 = vpop.permute.xlu0 %720
  %v723 = vadd.f32 %v713, %v721
  %v724 = vtanh.pop %v723
  %726 = vrot.lane.b32.xlu0 %v724, 64
  %v727 = vpop.permute.xlu0 %726
  %v729 = vmul.f32 %v711, %v727
  %731 = vrot.lane.b32.xlu0 %v729, 32
  %v732 = vpop.permute.xlu0 %731
  %734 = vst.msk [vmem:[#allocation2 + $0x30] sm:$0xff] %vm79, %v732
  %v735 = vld [vmem:[#allocation3 + $0x18] sm:$0xf0]
  %v737 = vrot.slane %v735, 4
  %v739 = vunpack.c.l.bf16 %v737
  %v740 = vpack.c.bf16 %v729, %v729
  %742 = vrot.lane.b32.xlu0 %v740, 32
  %v743 = vpop.permute.xlu0 %742
  %v745 = vsel %vm79, %v743, 0
  %747 = vmatprep.subr.bf16.mxu0 0
  %748 = vmatpush1.bf16.msra.mxu0 %v175
  %749 = vmatprep.subr.bf16.mxu0 0
  %750 = vmatpush1.bf16.msra.mxu0 %v176
  %751 = vmatprep.subr.bf16.mxu0 0
  %752 = vmatpush1.bf16.msra.mxu0 0
  %753 = vmatprep.subr.bf16.mxu0 0
  %754 = vmatpush1.bf16.msra.mxu0 0
  %755 = vmatprep.subr.bf16.mxu0 0
  %756 = vmatpush1.bf16.msra.mxu0 0
  %757 = vmatprep.subr.bf16.mxu0 0
  %758 = vmatpush1.bf16.msra.mxu0 0
  %759 = vmatprep.subr.bf16.mxu0 0
  %760 = vmatpush1.bf16.msra.mxu0 0
  %761 = vmatprep.subr.bf16.mxu0 0
  %762 = vmatpush1.bf16.msra.mxu0 0
  %763 = vmatprep.subr.bf16.mxu0 0
  %764 = vmatpush1.bf16.msra.mxu0 0
  %765 = vmatprep.subr.bf16.mxu0 0
  %766 = vmatpush1.bf16.msra.mxu0 0
  %767 = vmatprep.subr.bf16.mxu0 0
  %768 = vmatpush1.bf16.msra.mxu0 0
  %769 = vmatprep.subr.bf16.mxu0 0
  %770 = vmatpush1.bf16.msra.mxu0 0
  %771 = vmatprep.subr.bf16.mxu0 0
  %772 = vmatpush1.bf16.msra.mxu0 0
  %773 = vmatprep.subr.bf16.mxu0 0
  %774 = vmatpush1.bf16.msra.mxu0 0
  %775 = vmatprep.subr.bf16.mxu0 0
  %776 = vmatpush1.bf16.msra.mxu0 0
  %777 = vmatprep.subr.bf16.mxu0 0
  %778 = vmatpush1.bf16.msra.mxu0 0
  %779 = vmatprep.mubr.bf16.mxu0 0
  %780 = vmatmul.mubr.bf16.gmra.mrb[0].mxu0 %v745
  %v781 = vpop.f32.mrb[0].mxu0
  %v782 = vadd.f32 0.0, %v781
  %v783 = vpop.f32.mrb[0].mxu0
  %v784 = vpop.f32.mrb[0].mxu0
  %v785 = vpop.f32.mrb[0].mxu0
  %786 = vdwg.mxu0
  %v787 = vadd.f32 %v739, %v782
  %v788 = vxor.u32 %v787, 2147483648
  %v789 = vmul.f32 %v788, 1.442695
  %v790 = vpow.pop %v789
  %v791 = vadd.f32 %v790, 1.0
  %v792 = vrcp.pop %v791
  %v793 = vmul.f32 1.0, %v792
  %v794 = vtanh.pop %v787
  %v795 = vmul.f32 %v793, %v723
  %797 = vrot.lane.b32.xlu0 %v794, 64
  %v798 = vpop.permute.xlu0 %797
  %v800 = vmul.f32 %v793, %v798
  %802 = vrot.lane.b32.xlu0 %v800, 32
  %v803 = vpop.permute.xlu0 %802
  %v805 = vadd.f32 %v795, %v803
  %v806 = vtanh.pop %v805
  %808 = vrot.lane.b32.xlu0 %v806, 64
  %v809 = vpop.permute.xlu0 %808
  %v811 = vmul.f32 %v793, %v809
  %813 = vrot.lane.b32.xlu0 %v811, 32
  %v814 = vpop.permute.xlu0 %813
  %816 = vst.msk [vmem:[#allocation2 + $0x38] sm:$0xff] %vm79, %v814
  %s817 = scalar_lea.vmem %s1, 16
  %v818 = vld [vmem:[%s817] sm:$0xf]
  %v819 = vld [vmem:[%s817 + $0x4] sm:$0xf]
  %v820 = vld [vmem:[%s817 + $0x8] sm:$0xf]
  %v821 = vld [vmem:[%s817 + $0xc] sm:$0xf]
  %s822 = scalar_lea.vmem %s2, 16
  %v823 = vld [vmem:[%s822] sm:$0xf]
  %v824 = vld [vmem:[%s822 + $0x4] sm:$0xf]
  %v825 = vld [vmem:[%s822 + $0x8] sm:$0xf]
  %v826 = vld [vmem:[%s822 + $0xc] sm:$0xf]
  %s827 = scalar_lea.vmem %s3, 1
  %v828 = vld [vmem:[%s827] sm:$0x1]
  %v829 = vld [vmem:[#allocation2] sm:$0xff]
  %v830 = vld [vmem:[#allocation2 + $0x8] sm:$0xff]
  %v831 = vld [vmem:[#allocation2 + $0x10] sm:$0xff]
  %v832 = vld [vmem:[#allocation2 + $0x18] sm:$0xff]
  %v833 = vld [vmem:[#allocation2 + $0x20] sm:$0xff]
  %v834 = vld [vmem:[#allocation2 + $0x28] sm:$0xff]
  %v835 = vld [vmem:[#allocation2 + $0x30] sm:$0xff]
  %v836 = vld [vmem:[#allocation2 + $0x38] sm:$0xff]
  %v837 = vpack.c.bf16 %v830, %v829
  %v838 = vpack.c.bf16 %v832, %v831
  %v839 = vpack.c.bf16 %v834, %v833
  %v840 = vpack.c.bf16 %v836, %v835
  %v842 = vlaneseq
  %v843 = vshrl.u32 %v842, 7
  %v844 = vsub.s32 0, %v843
  %v845 = vrot.slane %v828, %v844
  %v851 = vunpack.c.l.b16 %v818
  %v852 = vunpack.c.l.b16 %v819
  %v853 = vunpack.c.l.b16 %v820
  %v854 = vunpack.c.l.b16 %v821
  %v855 = vpack.c.b16 %v852, %v851
  %v856 = vpack.c.b16 %v854, %v853
  %v860 = vsel %vm79, %v837, 0
  %v863 = vsel %vm79, %v838, 0
  %v866 = vsel %vm79, %v839, 0
  %v869 = vsel %vm79, %v840, 0
  %871 = vmatprep.subr.bf16.mxu0 0
  %872 = vmatpush1.bf16.msra.mxu0 %v855
  %873 = vmatprep.subr.bf16.mxu0 0
  %874 = vmatpush1.bf16.msra.mxu0 %v856
  %875 = vmatprep.subr.bf16.mxu0 0
  %876 = vmatpush1.bf16.msra.mxu0 0
  %877 = vmatprep.subr.bf16.mxu0 0
  %878 = vmatpush1.bf16.msra.mxu0 0
  %879 = vmatprep.subr.bf16.mxu0 0
  %880 = vmatpush1.bf16.msra.mxu0 0
  %881 = vmatprep.subr.bf16.mxu0 0
  %882 = vmatpush1.bf16.msra.mxu0 0
  %883 = vmatprep.subr.bf16.mxu0 0
  %884 = vmatpush1.bf16.msra.mxu0 0
  %885 = vmatprep.subr.bf16.mxu0 0
  %886 = vmatpush1.bf16.msra.mxu0 0
  %887 = vmatprep.subr.bf16.mxu0 0
  %888 = vmatpush1.bf16.msra.mxu0 0
  %889 = vmatprep.subr.bf16.mxu0 0
  %890 = vmatpush1.bf16.msra.mxu0 0
  %891 = vmatprep.subr.bf16.mxu0 0
  %892 = vmatpush1.bf16.msra.mxu0 0
  %893 = vmatprep.subr.bf16.mxu0 0
  %894 = vmatpush1.bf16.msra.mxu0 0
  %895 = vmatprep.subr.bf16.mxu0 0
  %896 = vmatpush1.bf16.msra.mxu0 0
  %897 = vmatprep.subr.bf16.mxu0 0
  %898 = vmatpush1.bf16.msra.mxu0 0
  %899 = vmatprep.subr.bf16.mxu0 0
  %900 = vmatpush1.bf16.msra.mxu0 0
  %901 = vmatprep.subr.bf16.mxu0 0
  %902 = vmatpush1.bf16.msra.mxu0 0
  %903 = vmatprep.mubr.bf16.mxu0 0
  %904 = vmatmul.mubr.bf16.gmra.mrb[0].mxu0 %v860
  %v905 = vpop.f32.mrb[0].mxu0
  %v906 = vadd.f32 %v845, %v905
  %v907 = vpop.f32.mrb[0].mxu0
  %v908 = vpop.f32.mrb[0].mxu0
  %v909 = vadd.f32 %v845, %v908
  %v910 = vpop.f32.mrb[0].mxu0
  %911 = vmatprep.mubr.bf16.mxu0 0
  %912 = vmatmul.mubr.bf16.gmra.mrb[0].mxu0 %v863
  %v913 = vpop.f32.mrb[0].mxu0
  %v914 = vadd.f32 %v845, %v913
  %v915 = vpop.f32.mrb[0].mxu0
  %v916 = vpop.f32.mrb[0].mxu0
  %v917 = vadd.f32 %v845, %v916
  %v918 = vpop.f32.mrb[0].mxu0
  %919 = vmatprep.mubr.bf16.mxu0 0
  %920 = vmatmul.mubr.bf16.gmra.mrb[0].mxu0 %v866
  %v921 = vpop.f32.mrb[0].mxu0
  %v922 = vadd.f32 %v845, %v921
  %v923 = vpop.f32.mrb[0].mxu0
  %v924 = vpop.f32.mrb[0].mxu0
  %v925 = vadd.f32 %v845, %v924
  %v926 = vpop.f32.mrb[0].mxu0
  %927 = vmatprep.mubr.bf16.mxu0 0
  %928 = vmatmul.mubr.bf16.gmra.mrb[0].mxu0 %v869
  %v929 = vpop.f32.mrb[0].mxu0
  %v930 = vadd.f32 %v845, %v929
  %v931 = vpop.f32.mrb[0].mxu0
  %v932 = vpop.f32.mrb[0].mxu0
  %v933 = vadd.f32 %v845, %v932
  %v934 = vpop.f32.mrb[0].mxu0
  %935 = vdwg.mxu0
  %v936 = vpack.c.bf16 %v909, %v906
  %v937 = vpack.c.bf16 %v917, %v914
  %v938 = vpack.c.bf16 %v925, %v922
  %v939 = vpack.c.bf16 %v933, %v930
  %940 = vst [vmem:[#allocation3] sm:$0xff] %v936
  %941 = vst [vmem:[#allocation3 + $0x8] sm:$0xff] %v937
  %942 = vst [vmem:[#allocation3 + $0x10] sm:$0xff] %v938
  %943 = vst [vmem:[#allocation3 + $0x18] sm:$0xff] %v939
  %v944 = vld [vmem:[#allocation3] sm:$0xf]
  %v945 = vunpack.c.l.bf16 %v944
  %v950 = vunpack.c.l.b16 %v823
  %v951 = vunpack.c.l.b16 %v824
  %v952 = vunpack.c.l.b16 %v825
  %v953 = vunpack.c.l.b16 %v826
  %v954 = vpack.c.b16 %v951, %v950
  %v955 = vpack.c.b16 %v953, %v952
  %958 = vmatprep.subr.bf16.mxu0 0
  %959 = vmatpush1.bf16.msra.mxu0 %v954
  %960 = vmatprep.subr.bf16.mxu0 0
  %961 = vmatpush1.bf16.msra.mxu0 %v955
  %962 = vmatprep.subr.bf16.mxu0 0
  %963 = vmatpush1.bf16.msra.mxu0 0
  %964 = vmatprep.subr.bf16.mxu0 0
  %965 = vmatpush1.bf16.msra.mxu0 0
  %966 = vmatprep.subr.bf16.mxu0 0
  %967 = vmatpush1.bf16.msra.mxu0 0
  %968 = vmatprep.subr.bf16.mxu0 0
  %969 = vmatpush1.bf16.msra.mxu0 0
  %970 = vmatprep.subr.bf16.mxu0 0
  %971 = vmatpush1.bf16.msra.mxu0 0
  %972 = vmatprep.subr.bf16.mxu0 0
  %973 = vmatpush1.bf16.msra.mxu0 0
  %974 = vmatprep.subr.bf16.mxu0 0
  %975 = vmatpush1.bf16.msra.mxu0 0
  %976 = vmatprep.subr.bf16.mxu0 0
  %977 = vmatpush1.bf16.msra.mxu0 0
  %978 = vmatprep.subr.bf16.mxu0 0
  %979 = vmatpush1.bf16.msra.mxu0 0
  %980 = vmatprep.subr.bf16.mxu0 0
  %981 = vmatpush1.bf16.msra.mxu0 0
  %982 = vmatprep.subr.bf16.mxu0 0
  %983 = vmatpush1.bf16.msra.mxu0 0
  %984 = vmatprep.subr.bf16.mxu0 0
  %985 = vmatpush1.bf16.msra.mxu0 0
  %986 = vmatprep.subr.bf16.mxu0 0
  %987 = vmatpush1.bf16.msra.mxu0 0
  %988 = vmatprep.subr.bf16.mxu0 0
  %989 = vmatpush1.bf16.msra.mxu0 0
  %990 = vmatprep.mubr.bf16.mxu0 0
  %991 = vmatmul.mubr.bf16.gmra.mrb[0].mxu0 %v180
  %v992 = vpop.f32.mrb[0].mxu0
  %v993 = vadd.f32 0.0, %v992
  %v994 = vpop.f32.mrb[0].mxu0
  %v995 = vpop.f32.mrb[0].mxu0
  %v996 = vpop.f32.mrb[0].mxu0
  %997 = vdwg.mxu0
  %v998 = vadd.f32 %v945, %v993
  %v999 = vxor.u32 %v998, 2147483648
  %v1000 = vmul.f32 %v999, 1.442695
  %v1001 = vpow.pop %v1000
  %v1002 = vadd.f32 %v1001, 1.0
  %v1003 = vrcp.pop %v1002
  %v1004 = vmul.f32 1.0, %v1003
  %v1005 = vtanh.pop %v998
  %v1006 = vmul.f32 %v1004, 0.0
  %1008 = vrot.lane.b32.xlu0 %v1005, 64
  %v1009 = vpop.permute.xlu0 %1008
  %v1011 = vmul.f32 %v1004, %v1009
  %1013 = vrot.lane.b32.xlu0 %v1011, 32
  %v1014 = vpop.permute.xlu0 %1013
  %v1016 = vadd.f32 %v1006, %v1014
  %v1017 = vtanh.pop %v1016
  %1019 = vrot.lane.b32.xlu0 %v1017, 64
  %v1020 = vpop.permute.xlu0 %1019
  %v1022 = vmul.f32 %v1004, %v1020
  %v1023 = vld [vmem:[#allocation3] sm:$0xf0]
  %v1025 = vrot.slane %v1023, 4
  %v1027 = vunpack.c.l.bf16 %v1025
  %v1028 = vpack.c.bf16 %v1022, %v1022
  %1030 = vrot.lane.b32.xlu0 %v1028, 32
  %v1031 = vpop.permute.xlu0 %1030
  %v1033 = vsel %vm79, %v1031, 0
  %1035 = vmatprep.subr.bf16.mxu0 0
  %1036 = vmatpush1.bf16.msra.mxu0 %v954
  %1037 = vmatprep.subr.bf16.mxu0 0
  %1038 = vmatpush1.bf16.msra.mxu0 %v955
  %1039 = vmatprep.subr.bf16.mxu0 0
  %1040 = vmatpush1.bf16.msra.mxu0 0
  %1041 = vmatprep.subr.bf16.mxu0 0
  %1042 = vmatpush1.bf16.msra.mxu0 0
  %1043 = vmatprep.subr.bf16.mxu0 0
  %1044 = vmatpush1.bf16.msra.mxu0 0
  %1045 = vmatprep.subr.bf16.mxu0 0
  %1046 = vmatpush1.bf16.msra.mxu0 0
  %1047 = vmatprep.subr.bf16.mxu0 0
  %1048 = vmatpush1.bf16.msra.mxu0 0
  %1049 = vmatprep.subr.bf16.mxu0 0
  %1050 = vmatpush1.bf16.msra.mxu0 0
  %1051 = vmatprep.subr.bf16.mxu0 0
  %1052 = vmatpush1.bf16.msra.mxu0 0
  %1053 = vmatprep.subr.bf16.mxu0 0
  %1054 = vmatpush1.bf16.msra.mxu0 0
  %1055 = vmatprep.subr.bf16.mxu0 0
  %1056 = vmatpush1.bf16.msra.mxu0 0
  %1057 = vmatprep.subr.bf16.mxu0 0
  %1058 = vmatpush1.bf16.msra.mxu0 0
  %1059 = vmatprep.subr.bf16.mxu0 0
  %1060 = vmatpush1.bf16.msra.mxu0 0
  %1061 = vmatprep.subr.bf16.mxu0 0
  %1062 = vmatpush1.bf16.msra.mxu0 0
  %1063 = vmatprep.subr.bf16.mxu0 0
  %1064 = vmatpush1.bf16.msra.mxu0 0
  %1065 = vmatprep.subr.bf16.mxu0 0
  %1066 = vmatpush1.bf16.msra.mxu0 0
  %1067 = vmatprep.mubr.bf16.mxu0 0
  %1068 = vmatmul.mubr.bf16.gmra.mrb[0].mxu0 %v1033
  %v1069 = vpop.f32.mrb[0].mxu0
  %v1070 = vadd.f32 0.0, %v1069
  %v1071 = vpop.f32.mrb[0].mxu0
  %v1072 = vpop.f32.mrb[0].mxu0
  %v1073 = vpop.f32.mrb[0].mxu0
  %1074 = vdwg.mxu0
  %v1075 = vadd.f32 %v1027, %v1070
  %v1076 = vxor.u32 %v1075, 2147483648
  %v1077 = vmul.f32 %v1076, 1.442695
  %v1078 = vpow.pop %v1077
  %v1079 = vadd.f32 %v1078, 1.0
  %v1080 = vrcp.pop %v1079
  %v1081 = vmul.f32 1.0, %v1080
  %v1082 = vtanh.pop %v1075
  %v1083 = vmul.f32 %v1081, %v1016
  %1085 = vrot.lane.b32.xlu0 %v1082, 64
  %v1086 = vpop.permute.xlu0 %1085
  %v1088 = vmul.f32 %v1081, %v1086
  %1090 = vrot.lane.b32.xlu0 %v1088, 32
  %v1091 = vpop.permute.xlu0 %1090
  %v1093 = vadd.f32 %v1083, %v1091
  %v1094 = vtanh.pop %v1093
  %1096 = vrot.lane.b32.xlu0 %v1094, 64
  %v1097 = vpop.permute.xlu0 %1096
  %v1099 = vmul.f32 %v1081, %v1097
  %v1100 = vld [vmem:[#allocation3 + $0x8] sm:$0xf]
  %v1101 = vunpack.c.l.bf16 %v1100
  %v1102 = vpack.c.bf16 %v1099, %v1099
  %1104 = vrot.lane.b32.xlu0 %v1102, 32
  %v1105 = vpop.permute.xlu0 %1104
  %v1107 = vsel %vm79, %v1105, 0
  %1109 = vmatprep.subr.bf16.mxu0 0
  %1110 = vmatpush1.bf16.msra.mxu0 %v954
  %1111 = vmatprep.subr.bf16.mxu0 0
  %1112 = vmatpush1.bf16.msra.mxu0 %v955
  %1113 = vmatprep.subr.bf16.mxu0 0
  %1114 = vmatpush1.bf16.msra.mxu0 0
  %1115 = vmatprep.subr.bf16.mxu0 0
  %1116 = vmatpush1.bf16.msra.mxu0 0
  %1117 = vmatprep.subr.bf16.mxu0 0
  %1118 = vmatpush1.bf16.msra.mxu0 0
  %1119 = vmatprep.subr.bf16.mxu0 0
  %1120 = vmatpush1.bf16.msra.mxu0 0
  %1121 = vmatprep.subr.bf16.mxu0 0
  %1122 = vmatpush1.bf16.msra.mxu0 0
  %1123 = vmatprep.subr.bf16.mxu0 0
  %1124 = vmatpush1.bf16.msra.mxu0 0
  %1125 = vmatprep.subr.bf16.mxu0 0
  %1126 = vmatpush1.bf16.msra.mxu0 0
  %1127 = vmatprep.subr.bf16.mxu0 0
  %1128 = vmatpush1.bf16.msra.mxu0 0
  %1129 = vmatprep.subr.bf16.mxu0 0
  %1130 = vmatpush1.bf16.msra.mxu0 0
  %1131 = vmatprep.subr.bf16.mxu0 0
  %1132 = vmatpush1.bf16.msra.mxu0 0
  %1133 = vmatprep.subr.bf16.mxu0 0
  %1134 = vmatpush1.bf16.msra.mxu0 0
  %1135 = vmatprep.subr.bf16.mxu0 0
  %1136 = vmatpush1.bf16.msra.mxu0 0
  %1137 = vmatprep.subr.bf16.mxu0 0
  %1138 = vmatpush1.bf16.msra.mxu0 0
  %1139 = vmatprep.subr.bf16.mxu0 0
  %1140 = vmatpush1.bf16.msra.mxu0 0
  %1141 = vmatprep.mubr.bf16.mxu0 0
  %1142 = vmatmul.mubr.bf16.gmra.mrb[0].mxu0 %v1107
  %v1143 = vpop.f32.mrb[0].mxu0
  %v1144 = vadd.f32 0.0, %v1143
  %v1145 = vpop.f32.mrb[0].mxu0
  %v1146 = vpop.f32.mrb[0].mxu0
  %v1147 = vpop.f32.mrb[0].mxu0
  %1148 = vdwg.mxu0
  %v1149 = vadd.f32 %v1101, %v1144
  %v1150 = vxor.u32 %v1149, 2147483648
  %v1151 = vmul.f32 %v1150, 1.442695
  %v1152 = vpow.pop %v1151
  %v1153 = vadd.f32 %v1152, 1.0
  %v1154 = vrcp.pop %v1153
  %v1155 = vmul.f32 1.0, %v1154
  %v1156 = vtanh.pop %v1149
  %v1157 = vmul.f32 %v1155, %v1093
  %1159 = vrot.lane.b32.xlu0 %v1156, 64
  %v1160 = vpop.permute.xlu0 %1159
  %v1162 = vmul.f32 %v1155, %v1160
  %1164 = vrot.lane.b32.xlu0 %v1162, 32
  %v1165 = vpop.permute.xlu0 %1164
  %v1167 = vadd.f32 %v1157, %v1165
  %v1168 = vtanh.pop %v1167
  %1170 = vrot.lane.b32.xlu0 %v1168, 64
  %v1171 = vpop.permute.xlu0 %1170
  %v1173 = vmul.f32 %v1155, %v1171
  %v1174 = vld [vmem:[#allocation3 + $0x8] sm:$0xf0]
  %v1176 = vrot.slane %v1174, 4
  %v1178 = vunpack.c.l.bf16 %v1176
  %v1179 = vpack.c.bf16 %v1173, %v1173
  %1181 = vrot.lane.b32.xlu0 %v1179, 32
  %v1182 = vpop.permute.xlu0 %1181
  %v1184 = vsel %vm79, %v1182, 0
  %1186 = vmatprep.subr.bf16.mxu0 0
  %1187 = vmatpush1.bf16.msra.mxu0 %v954
  %1188 = vmatprep.subr.bf16.mxu0 0
  %1189 = vmatpush1.bf16.msra.mxu0 %v955
  %1190 = vmatprep.subr.bf16.mxu0 0
  %1191 = vmatpush1.bf16.msra.mxu0 0
  %1192 = vmatprep.subr.bf16.mxu0 0
  %1193 = vmatpush1.bf16.msra.mxu0 0
  %1194 = vmatprep.subr.bf16.mxu0 0
  %1195 = vmatpush1.bf16.msra.mxu0 0
  %1196 = vmatprep.subr.bf16.mxu0 0
  %1197 = vmatpush1.bf16.msra.mxu0 0
  %1198 = vmatprep.subr.bf16.mxu0 0
  %1199 = vmatpush1.bf16.msra.mxu0 0
  %1200 = vmatprep.subr.bf16.mxu0 0
  %1201 = vmatpush1.bf16.msra.mxu0 0
  %1202 = vmatprep.subr.bf16.mxu0 0
  %1203 = vmatpush1.bf16.msra.mxu0 0
  %1204 = vmatprep.subr.bf16.mxu0 0
  %1205 = vmatpush1.bf16.msra.mxu0 0
  %1206 = vmatprep.subr.bf16.mxu0 0
  %1207 = vmatpush1.bf16.msra.mxu0 0
  %1208 = vmatprep.subr.bf16.mxu0 0
  %1209 = vmatpush1.bf16.msra.mxu0 0
  %1210 = vmatprep.subr.bf16.mxu0 0
  %1211 = vmatpush1.bf16.msra.mxu0 0
  %1212 = vmatprep.subr.bf16.mxu0 0
  %1213 = vmatpush1.bf16.msra.mxu0 0
  %1214 = vmatprep.subr.bf16.mxu0 0
  %1215 = vmatpush1.bf16.msra.mxu0 0
  %1216 = vmatprep.subr.bf16.mxu0 0
  %1217 = vmatpush1.bf16.msra.mxu0 0
  %1218 = vmatprep.mubr.bf16.mxu0 0
  %1219 = vmatmul.mubr.bf16.gmra.mrb[0].mxu0 %v1184
  %v1220 = vpop.f32.mrb[0].mxu0
  %v1221 = vadd.f32 0.0, %v1220
  %v1222 = vpop.f32.mrb[0].mxu0
  %v1223 = vpop.f32.mrb[0].mxu0
  %v1224 = vpop.f32.mrb[0].mxu0
  %1225 = vdwg.mxu0
  %v1226 = vadd.f32 %v1178, %v1221
  %v1227 = vxor.u32 %v1226, 2147483648
  %v1228 = vmul.f32 %v1227, 1.442695
  %v1229 = vpow.pop %v1228
  %v1230 = vadd.f32 %v1229, 1.0
  %v1231 = vrcp.pop %v1230
  %v1232 = vmul.f32 1.0, %v1231
  %v1233 = vtanh.pop %v1226
  %v1234 = vmul.f32 %v1232, %v1167
  %1236 = vrot.lane.b32.xlu0 %v1233, 64
  %v1237 = vpop.permute.xlu0 %1236
  %v1239 = vmul.f32 %v1232, %v1237
  %1241 = vrot.lane.b32.xlu0 %v1239, 32
  %v1242 = vpop.permute.xlu0 %1241
  %v1244 = vadd.f32 %v1234, %v1242
  %v1245 = vtanh.pop %v1244
  %1247 = vrot.lane.b32.xlu0 %v1245, 64
  %v1248 = vpop.permute.xlu0 %1247
  %v1250 = vmul.f32 %v1232, %v1248
  %v1251 = vld [vmem:[#allocation3 + $0x10] sm:$0xf]
  %v1252 = vunpack.c.l.bf16 %v1251
  %v1253 = vpack.c.bf16 %v1250, %v1250
  %1255 = vrot.lane.b32.xlu0 %v1253, 32
  %v1256 = vpop.permute.xlu0 %1255
  %v1258 = vsel %vm79, %v1256, 0
  %1260 = vmatprep.subr.bf16.mxu0 0
  %1261 = vmatpush1.bf16.msra.mxu0 %v954
  %1262 = vmatprep.subr.bf16.mxu0 0
  %1263 = vmatpush1.bf16.msra.mxu0 %v955
  %1264 = vmatprep.subr.bf16.mxu0 0
  %1265 = vmatpush1.bf16.msra.mxu0 0
  %1266 = vmatprep.subr.bf16.mxu0 0
  %1267 = vmatpush1.bf16.msra.mxu0 0
  %1268 = vmatprep.subr.bf16.mxu0 0
  %1269 = vmatpush1.bf16.msra.mxu0 0
  %1270 = vmatprep.subr.bf16.mxu0 0
  %1271 = vmatpush1.bf16.msra.mxu0 0
  %1272 = vmatprep.subr.bf16.mxu0 0
  %1273 = vmatpush1.bf16.msra.mxu0 0
  %1274 = vmatprep.subr.bf16.mxu0 0
  %1275 = vmatpush1.bf16.msra.mxu0 0
  %1276 = vmatprep.subr.bf16.mxu0 0
  %1277 = vmatpush1.bf16.msra.mxu0 0
  %1278 = vmatprep.subr.bf16.mxu0 0
  %1279 = vmatpush1.bf16.msra.mxu0 0
  %1280 = vmatprep.subr.bf16.mxu0 0
  %1281 = vmatpush1.bf16.msra.mxu0 0
  %1282 = vmatprep.subr.bf16.mxu0 0
  %1283 = vmatpush1.bf16.msra.mxu0 0
  %1284 = vmatprep.subr.bf16.mxu0 0
  %1285 = vmatpush1.bf16.msra.mxu0 0
  %1286 = vmatprep.subr.bf16.mxu0 0
  %1287 = vmatpush1.bf16.msra.mxu0 0
  %1288 = vmatprep.subr.bf16.mxu0 0
  %1289 = vmatpush1.bf16.msra.mxu0 0
  %1290 = vmatprep.subr.bf16.mxu0 0
  %1291 = vmatpush1.bf16.msra.mxu0 0
  %1292 = vmatprep.mubr.bf16.mxu0 0
  %1293 = vmatmul.mubr.bf16.gmra.mrb[0].mxu0 %v1258
  %v1294 = vpop.f32.mrb[0].mxu0
  %v1295 = vadd.f32 0.0, %v1294
  %v1296 = vpop.f32.mrb[0].mxu0
  %v1297 = vpop.f32.mrb[0].mxu0
  %v1298 = vpop.f32.mrb[0].mxu0
  %1299 = vdwg.mxu0
  %v1300 = vadd.f32 %v1252, %v1295
  %v1301 = vxor.u32 %v1300, 2147483648
  %v1302 = vmul.f32 %v1301, 1.442695
  %v1303 = vpow.pop %v1302
  %v1304 = vadd.f32 %v1303, 1.0
  %v1305 = vrcp.pop %v1304
  %v1306 = vmul.f32 1.0, %v1305
  %v1307 = vtanh.pop %v1300
  %v1308 = vmul.f32 %v1306, %v1244
  %1310 = vrot.lane.b32.xlu0 %v1307, 64
  %v1311 = vpop.permute.xlu0 %1310
  %v1313 = vmul.f32 %v1306, %v1311
  %1315 = vrot.lane.b32.xlu0 %v1313, 32
  %v1316 = vpop.permute.xlu0 %1315
  %v1318 = vadd.f32 %v1308, %v1316
  %v1319 = vtanh.pop %v1318
  %1321 = vrot.lane.b32.xlu0 %v1319, 64
  %v1322 = vpop.permute.xlu0 %1321
  %v1324 = vmul.f32 %v1306, %v1322
  %v1325 = vld [vmem:[#allocation3 + $0x10] sm:$0xf0]
  %v1327 = vrot.slane %v1325, 4
  %v1329 = vunpack.c.l.bf16 %v1327
  %v1330 = vpack.c.bf16 %v1324, %v1324
  %1332 = vrot.lane.b32.xlu0 %v1330, 32
  %v1333 = vpop.permute.xlu0 %1332
  %v1335 = vsel %vm79, %v1333, 0
  %1337 = vmatprep.subr.bf16.mxu0 0
  %1338 = vmatpush1.bf16.msra.mxu0 %v954
  %1339 = vmatprep.subr.bf16.mxu0 0
  %1340 = vmatpush1.bf16.msra.mxu0 %v955
  %1341 = vmatprep.subr.bf16.mxu0 0
  %1342 = vmatpush1.bf16.msra.mxu0 0
  %1343 = vmatprep.subr.bf16.mxu0 0
  %1344 = vmatpush1.bf16.msra.mxu0 0
  %1345 = vmatprep.subr.bf16.mxu0 0
  %1346 = vmatpush1.bf16.msra.mxu0 0
  %1347 = vmatprep.subr.bf16.mxu0 0
  %1348 = vmatpush1.bf16.msra.mxu0 0
  %1349 = vmatprep.subr.bf16.mxu0 0
  %1350 = vmatpush1.bf16.msra.mxu0 0
  %1351 = vmatprep.subr.bf16.mxu0 0
  %1352 = vmatpush1.bf16.msra.mxu0 0
  %1353 = vmatprep.subr.bf16.mxu0 0
  %1354 = vmatpush1.bf16.msra.mxu0 0
  %1355 = vmatprep.subr.bf16.mxu0 0
  %1356 = vmatpush1.bf16.msra.mxu0 0
  %1357 = vmatprep.subr.bf16.mxu0 0
  %1358 = vmatpush1.bf16.msra.mxu0 0
  %1359 = vmatprep.subr.bf16.mxu0 0
  %1360 = vmatpush1.bf16.msra.mxu0 0
  %1361 = vmatprep.subr.bf16.mxu0 0
  %1362 = vmatpush1.bf16.msra.mxu0 0
  %1363 = vmatprep.subr.bf16.mxu0 0
  %1364 = vmatpush1.bf16.msra.mxu0 0
  %1365 = vmatprep.subr.bf16.mxu0 0
  %1366 = vmatpush1.bf16.msra.mxu0 0
  %1367 = vmatprep.subr.bf16.mxu0 0
  %1368 = vmatpush1.bf16.msra.mxu0 0
  %1369 = vmatprep.mubr.bf16.mxu0 0
  %1370 = vmatmul.mubr.bf16.gmra.mrb[0].mxu0 %v1335
  %v1371 = vpop.f32.mrb[0].mxu0
  %v1372 = vadd.f32 0.0, %v1371
  %v1373 = vpop.f32.mrb[0].mxu0
  %v1374 = vpop.f32.mrb[0].mxu0
  %v1375 = vpop.f32.mrb[0].mxu0
  %1376 = vdwg.mxu0
  %v1377 = vadd.f32 %v1329, %v1372
  %v1378 = vxor.u32 %v1377, 2147483648
  %v1379 = vmul.f32 %v1378, 1.442695
  %v1380 = vpow.pop %v1379
  %v1381 = vadd.f32 %v1380, 1.0
  %v1382 = vrcp.pop %v1381
  %v1383 = vmul.f32 1.0, %v1382
  %v1384 = vtanh.pop %v1377
  %v1385 = vmul.f32 %v1383, %v1318
  %1387 = vrot.lane.b32.xlu0 %v1384, 64
  %v1388 = vpop.permute.xlu0 %1387
  %v1390 = vmul.f32 %v1383, %v1388
  %1392 = vrot.lane.b32.xlu0 %v1390, 32
  %v1393 = vpop.permute.xlu0 %1392
  %v1395 = vadd.f32 %v1385, %v1393
  %v1396 = vtanh.pop %v1395
  %1398 = vrot.lane.b32.xlu0 %v1396, 64
  %v1399 = vpop.permute.xlu0 %1398
  %v1401 = vmul.f32 %v1383, %v1399
  %v1402 = vld [vmem:[#allocation3 + $0x18] sm:$0xf]
  %v1403 = vunpack.c.l.bf16 %v1402
  %v1404 = vpack.c.bf16 %v1401, %v1401
  %1406 = vrot.lane.b32.xlu0 %v1404, 32
  %v1407 = vpop.permute.xlu0 %1406
  %v1409 = vsel %vm79, %v1407, 0
  %1411 = vmatprep.subr.bf16.mxu0 0
  %1412 = vmatpush1.bf16.msra.mxu0 %v954
  %1413 = vmatprep.subr.bf16.mxu0 0
  %1414 = vmatpush1.bf16.msra.mxu0 %v955
  %1415 = vmatprep.subr.bf16.mxu0 0
  %1416 = vmatpush1.bf16.msra.mxu0 0
  %1417 = vmatprep.subr.bf16.mxu0 0
  %1418 = vmatpush1.bf16.msra.mxu0 0
  %1419 = vmatprep.subr.bf16.mxu0 0
  %1420 = vmatpush1.bf16.msra.mxu0 0
  %1421 = vmatprep.subr.bf16.mxu0 0
  %1422 = vmatpush1.bf16.msra.mxu0 0
  %1423 = vmatprep.subr.bf16.mxu0 0
  %1424 = vmatpush1.bf16.msra.mxu0 0
  %1425 = vmatprep.subr.bf16.mxu0 0
  %1426 = vmatpush1.bf16.msra.mxu0 0
  %1427 = vmatprep.subr.bf16.mxu0 0
  %1428 = vmatpush1.bf16.msra.mxu0 0
  %1429 = vmatprep.subr.bf16.mxu0 0
  %1430 = vmatpush1.bf16.msra.mxu0 0
  %1431 = vmatprep.subr.bf16.mxu0 0
  %1432 = vmatpush1.bf16.msra.mxu0 0
  %1433 = vmatprep.subr.bf16.mxu0 0
  %1434 = vmatpush1.bf16.msra.mxu0 0
  %1435 = vmatprep.subr.bf16.mxu0 0
  %1436 = vmatpush1.bf16.msra.mxu0 0
  %1437 = vmatprep.subr.bf16.mxu0 0
  %1438 = vmatpush1.bf16.msra.mxu0 0
  %1439 = vmatprep.subr.bf16.mxu0 0
  %1440 = vmatpush1.bf16.msra.mxu0 0
  %1441 = vmatprep.subr.bf16.mxu0 0
  %1442 = vmatpush1.bf16.msra.mxu0 0
  %1443 = vmatprep.mubr.bf16.mxu0 0
  %1444 = vmatmul.mubr.bf16.gmra.mrb[0].mxu0 %v1409
  %v1445 = vpop.f32.mrb[0].mxu0
  %v1446 = vadd.f32 0.0, %v1445
  %v1447 = vpop.f32.mrb[0].mxu0
  %v1448 = vpop.f32.mrb[0].mxu0
  %v1449 = vpop.f32.mrb[0].mxu0
  %1450 = vdwg.mxu0
  %v1451 = vadd.f32 %v1403, %v1446
  %v1452 = vxor.u32 %v1451, 2147483648
  %v1453 = vmul.f32 %v1452, 1.442695
  %v1454 = vpow.pop %v1453
  %v1455 = vadd.f32 %v1454, 1.0
  %v1456 = vrcp.pop %v1455
  %v1457 = vmul.f32 1.0, %v1456
  %v1458 = vtanh.pop %v1451
  %v1459 = vmul.f32 %v1457, %v1395
  %1461 = vrot.lane.b32.xlu0 %v1458, 64
  %v1462 = vpop.permute.xlu0 %1461
  %v1464 = vmul.f32 %v1457, %v1462
  %1466 = vrot.lane.b32.xlu0 %v1464, 32
  %v1467 = vpop.permute.xlu0 %1466
  %v1469 = vadd.f32 %v1459, %v1467
  %v1470 = vtanh.pop %v1469
  %1472 = vrot.lane.b32.xlu0 %v1470, 64
  %v1473 = vpop.permute.xlu0 %1472
  %v1475 = vmul.f32 %v1457, %v1473
  %v1476 = vld [vmem:[#allocation3 + $0x18] sm:$0xf0]
  %v1478 = vrot.slane %v1476, 4
  %v1480 = vunpack.c.l.bf16 %v1478
  %v1481 = vpack.c.bf16 %v1475, %v1475
  %1483 = vrot.lane.b32.xlu0 %v1481, 32
  %v1484 = vpop.permute.xlu0 %1483
  %v1486 = vsel %vm79, %v1484, 0
  %1488 = vmatprep.subr.bf16.mxu0 0
  %1489 = vmatpush1.bf16.msra.mxu0 %v954
  %1490 = vmatprep.subr.bf16.mxu0 0
  %1491 = vmatpush1.bf16.msra.mxu0 %v955
  %1492 = vmatprep.subr.bf16.mxu0 0
  %1493 = vmatpush1.bf16.msra.mxu0 0
  %1494 = vmatprep.subr.bf16.mxu0 0
  %1495 = vmatpush1.bf16.msra.mxu0 0
  %1496 = vmatprep.subr.bf16.mxu0 0
  %1497 = vmatpush1.bf16.msra.mxu0 0
  %1498 = vmatprep.subr.bf16.mxu0 0
  %1499 = vmatpush1.bf16.msra.mxu0 0
  %1500 = vmatprep.subr.bf16.mxu0 0
  %1501 = vmatpush1.bf16.msra.mxu0 0
  %1502 = vmatprep.subr.bf16.mxu0 0
  %1503 = vmatpush1.bf16.msra.mxu0 0
  %1504 = vmatprep.subr.bf16.mxu0 0
  %1505 = vmatpush1.bf16.msra.mxu0 0
  %1506 = vmatprep.subr.bf16.mxu0 0
  %1507 = vmatpush1.bf16.msra.mxu0 0
  %1508 = vmatprep.subr.bf16.mxu0 0
  %1509 = vmatpush1.bf16.msra.mxu0 0
  %1510 = vmatprep.subr.bf16.mxu0 0
  %1511 = vmatpush1.bf16.msra.mxu0 0
  %1512 = vmatprep.subr.bf16.mxu0 0
  %1513 = vmatpush1.bf16.msra.mxu0 0
  %1514 = vmatprep.subr.bf16.mxu0 0
  %1515 = vmatpush1.bf16.msra.mxu0 0
  %1516 = vmatprep.subr.bf16.mxu0 0
  %1517 = vmatpush1.bf16.msra.mxu0 0
  %1518 = vmatprep.subr.bf16.mxu0 0
  %1519 = vmatpush1.bf16.msra.mxu0 0
  %1520 = vmatprep.mubr.bf16.mxu0 0
  %1521 = vmatmul.mubr.bf16.gmra.mrb[0].mxu0 %v1486
  %v1522 = vpop.f32.mrb[0].mxu0
  %v1523 = vadd.f32 0.0, %v1522
  %v1524 = vpop.f32.mrb[0].mxu0
  %v1525 = vpop.f32.mrb[0].mxu0
  %v1526 = vpop.f32.mrb[0].mxu0
  %1527 = vdwg.mxu0
  %v1528 = vadd.f32 %v1480, %v1523
  %v1529 = vxor.u32 %v1528, 2147483648
  %v1530 = vmul.f32 %v1529, 1.442695
  %v1531 = vpow.pop %v1530
  %v1532 = vadd.f32 %v1531, 1.0
  %v1533 = vrcp.pop %v1532
  %v1534 = vmul.f32 1.0, %v1533
  %v1535 = vtanh.pop %v1528
  %v1536 = vmul.f32 %v1534, %v1469
  %1538 = vrot.lane.b32.xlu0 %v1535, 64
  %v1539 = vpop.permute.xlu0 %1538
  %v1541 = vmul.f32 %v1534, %v1539
  %1543 = vrot.lane.b32.xlu0 %v1541, 32
  %v1544 = vpop.permute.xlu0 %1543
  %v1546 = vadd.f32 %v1536, %v1544
  %v1547 = vtanh.pop %v1546
  %1549 = vrot.lane.b32.xlu0 %v1547, 64
  %v1550 = vpop.permute.xlu0 %1549
  %v1552 = vmul.f32 %v1534, %v1550
  %v1553 = vpack.c.bf16 %v1552, %v1552
  %v1554 = vld [vmem:[%s4] sm:$0xf]
  %v1555 = vld [vmem:[%s4 + $0x4] sm:$0xf]
  %v1556 = vld [vmem:[%s4 + $0x8] sm:$0xf]
  %v1557 = vld [vmem:[%s4 + $0xc] sm:$0xf]
  %v1558 = vld [vmem:[%s5] sm:$0x1]
  %v1560 = vlaneseq
  %v1561 = vshrl.u32 %v1560, 7
  %v1562 = vsub.s32 0, %v1561
  %v1563 = vrot.slane %v1558, %v1562
  %1566 = vrot.lane.b32.xlu0 %v1553, 32
  %v1567 = vpop.permute.xlu0 %1566
  %v1572 = vunpack.c.l.b16 %v1554
  %v1573 = vunpack.c.l.b16 %v1555
  %v1574 = vunpack.c.l.b16 %v1556
  %v1575 = vunpack.c.l.b16 %v1557
  %v1576 = vpack.c.b16 %v1573, %v1572
  %v1577 = vpack.c.b16 %v1575, %v1574
  %v1581 = vsel %vm79, %v1567, 0
  %1583 = vmatprep.subr.bf16.mxu0 0
  %1584 = vmatpush1.bf16.msra.mxu0 %v1576
  %1585 = vmatprep.subr.bf16.mxu0 0
  %1586 = vmatpush1.bf16.msra.mxu0 %v1577
  %1587 = vmatprep.subr.bf16.mxu0 0
  %1588 = vmatpush1.bf16.msra.mxu0 0
  %1589 = vmatprep.subr.bf16.mxu0 0
  %1590 = vmatpush1.bf16.msra.mxu0 0
  %1591 = vmatprep.subr.bf16.mxu0 0
  %1592 = vmatpush1.bf16.msra.mxu0 0
  %1593 = vmatprep.subr.bf16.mxu0 0
  %1594 = vmatpush1.bf16.msra.mxu0 0
  %1595 = vmatprep.subr.bf16.mxu0 0
  %1596 = vmatpush1.bf16.msra.mxu0 0
  %1597 = vmatprep.subr.bf16.mxu0 0
  %1598 = vmatpush1.bf16.msra.mxu0 0
  %1599 = vmatprep.subr.bf16.mxu0 0
  %1600 = vmatpush1.bf16.msra.mxu0 0
  %1601 = vmatprep.subr.bf16.mxu0 0
  %1602 = vmatpush1.bf16.msra.mxu0 0
  %1603 = vmatprep.subr.bf16.mxu0 0
  %1604 = vmatpush1.bf16.msra.mxu0 0
  %1605 = vmatprep.subr.bf16.mxu0 0
  %1606 = vmatpush1.bf16.msra.mxu0 0
  %1607 = vmatprep.subr.bf16.mxu0 0
  %1608 = vmatpush1.bf16.msra.mxu0 0
  %1609 = vmatprep.subr.bf16.mxu0 0
  %1610 = vmatpush1.bf16.msra.mxu0 0
  %1611 = vmatprep.subr.bf16.mxu0 0
  %1612 = vmatpush1.bf16.msra.mxu0 0
  %1613 = vmatprep.subr.bf16.mxu0 0
  %1614 = vmatpush1.bf16.msra.mxu0 0
  %1615 = vmatprep.mubr.bf16.mxu0 0
  %1616 = vmatmul.mubr.bf16.gmra.mrb[0].mxu0 %v1581
  %v1617 = vpop.f32.mrb[0].mxu0
  %v1618 = vadd.f32 %v1563, %v1617
  %v1619 = vpop.f32.mrb[0].mxu0
  %v1620 = vpop.f32.mrb[0].mxu0
  %v1621 = vpop.f32.mrb[0].mxu0
  %1622 = vdwg.mxu0
  %1623 = vst [vmem:[%s6] sm:$0xff] %v1618
  // Predicated region
  $region26: #{lstm_forward.1} parent=0 // pred_check
    _
  $region27: #{lstm_forward.1} parent=0 // pred_check_branch
    %1625 = sbr.rel (0) target = $region29
  $region28: #{lstm_forward.1} parent=0 // pred_region
    _
  $region29: #{lstm_forward.1} parent=0 // pred_fallthru
    _
  // Predicated region
  $region30: #{lstm_forward.1} parent=0 // pred_check
    _
  $region31: #{lstm_forward.1} parent=0 // pred_check_branch
    %1627 = sbr.rel (0) target = $region33
  $region32: #{lstm_forward.1} parent=0 // pred_region
    _
  $region33: #{lstm_forward.1} parent=0 // pred_fallthru
    _

</llo_original>
